<compile_context>
chip_gen: v7x
topology: tpu7x:2x2x1
jax: 0.10.0
libtpu: 0.0.40
codegen_flags: <defaults>
</compile_context>

<pallas_src>
import functools

import jax
import jax.numpy as jnp
from jax import lax
from jax.experimental import pallas as pl
from jax.experimental.pallas import tpu as pltpu


def _depthwise_pointwise_kernel(x_ref, w_ref, b_ref, o_ref, xp_ref, *,
                                H, W, C, Cout, K, P, S, Ho, Wo, matmul_dtype):
    # x_ref:  (1, H, W, C)      un-padded NHWC input, one batch element
    # w_ref:  (K*K, Cout, C)    fully folded (dw * BN-scale * pw) weights, tap-major
    # b_ref:  (Cout, 1)         fully folded bias
    # o_ref:  (1, Cout, Ho*Wo)  lane-dense output block
    # xp_ref: (Hp, Wp, C)       VMEM scratch holding the zero-padded image

    # ---- in-kernel zero padding (replaces the wrapper-side jnp.pad HBM pass) ----
    if P > 0:
        xp_ref[...] = jnp.zeros(xp_ref.shape, xp_ref.dtype)
    xp_ref[P:P + H, P:P + W, :] = x_ref[0]

    def tap_slice(k0, extent):
        # indices k0, k0 + S, ..., k0 + (extent-1)*S  (strided ref load, no XLU gather)
        if S == 1:
            return pl.ds(k0, extent)
        return pl.ds(k0, extent, S)

    # ---- K*K MXU matmuls, accumulated in f32 ----
    acc = jnp.zeros((Cout, Ho * Wo), jnp.float32)
    for kk in range(K * K):
        kh, kw = kk // K, kk % K
        # Window sliced directly from the VMEM ref: pure row/sublane offsets,
        # the lane (channel) axis is never shifted.
        win = xp_ref[tap_slice(kh, Ho), tap_slice(kw, Wo), :]          # (Ho, Wo, C)
        win2 = win.reshape(Ho * Wo, C).astype(matmul_dtype)            # lane dim = C kept
        acc = acc + lax.dot_general(
            w_ref[kk], win2,
            dimension_numbers=(((1,), (1,)), ((), ())),
            preferred_element_type=jnp.float32)                        # (Cout, Ho*Wo)

    out = acc + b_ref[...]                                             # (Cout, 1) lane-bcast
    o_ref[0] = out.astype(o_ref.dtype)                                 # lane-dense store


def depthwise_forward(x, params, *, kernel_size, padding, stride, eps=1e-5,
                      matmul_dtype=jnp.bfloat16, out_dtype=None):
    """x: (N, C, H, W) float32 (PyTorch NCHW).  params: dict of module params."""
    N, C, H, W = x.shape
    K, P, S = kernel_size, padding, stride
    w_dw = params["w_dw"]          # (C, 1, K, K)
    b_dw = params["b_dw"]          # (C,)
    gamma = params["bn_gamma"]     # (C,)
    beta = params["bn_beta"]       # (C,)
    mean = params["bn_mean"]       # (C,)
    var = params["bn_var"]         # (C,)
    w_pw = params["w_pw"]          # (Cout, C, 1, 1)
    b_pw = params["b_pw"]          # (Cout,)
    Cout = w_pw.shape[0]

    Ho = (H + 2 * P - K) // S + 1
    Wo = (W + 2 * P - K) // S + 1
    Hp, Wp = H + 2 * P, W + 2 * P
    out_dtype = x.dtype if out_dtype is None else out_dtype

    # ---- fold depthwise conv + BatchNorm(eval) + 1x1 conv into one conv ----
    bn_scale = gamma / jnp.sqrt(var + eps)                            # (C,)
    w_pw2d = w_pw[:, :, 0, 0]                                         # (Cout, C)
    w_eff_dw = w_dw[:, 0] * bn_scale[:, None, None]                   # (C, K, K)
    # W_comb[kh, kw, co, c] = w_pw2d[co, c] * w_eff_dw[c, kh, kw]
    w_comb = (jnp.transpose(w_eff_dw, (1, 2, 0))[:, :, None, :]
              * w_pw2d[None, None, :, :])                             # (K, K, Cout, C)
    w_comb = w_comb.reshape(K * K, Cout, C).astype(matmul_dtype)
    shift = (b_dw - mean) * bn_scale + beta                           # (C,)
    b_comb = (w_pw2d @ shift + b_pw).reshape(Cout, 1).astype(jnp.float32)

    # NCHW -> NHWC: layout plumbing only (no padding pass).
    x_nhwc = jnp.transpose(x, (0, 2, 3, 1))                           # (N, H, W, C)

    kernel = functools.partial(_depthwise_pointwise_kernel,
                               H=H, W=W, C=C, Cout=Cout, K=K, P=P, S=S,
                               Ho=Ho, Wo=Wo, matmul_dtype=matmul_dtype)

    out_flat = pl.pallas_call(
        kernel,
        out_shape=jax.ShapeDtypeStruct((N, Cout, Ho * Wo), out_dtype),
        grid=(N,),
        in_specs=[
            pl.BlockSpec((1, H, W, C), lambda n: (n, 0, 0, 0)),
            pl.BlockSpec((K * K, Cout, C), lambda n: (0, 0, 0)),
            pl.BlockSpec((Cout, 1), lambda n: (0, 0)),
        ],
        out_specs=pl.BlockSpec((1, Cout, Ho * Wo), lambda n: (n, 0, 0)),
        scratch_shapes=[pltpu.VMEM((Hp, Wp, C), jnp.float32)],
        compiler_params=pltpu.CompilerParams(
            dimension_semantics=("parallel",),
            vmem_limit_bytes=48 * 1024 * 1024),
    )(x_nhwc, w_comb, b_comb)

    # (N, Cout, Ho*Wo) -> (N, Cout, Ho, Wo): trailing-dim split, free reshape.
    return out_flat.reshape(N, Cout, Ho, Wo)


def _reference_forward(x, params, *, kernel_size, padding, stride, eps=1e-5):
    """Pure-JAX f32 reference matching PyTorch nn.Sequential semantics (BN eval)."""
    C = x.shape[1]
    P, S = padding, stride
    dn = ("NCHW", "OIHW", "NCHW")
    y = lax.conv_general_dilated(
        x, params["w_dw"], window_strides=(S, S), padding=[(P, P), (P, P)],
        dimension_numbers=dn, feature_group_count=C)
    y = y + params["b_dw"][None, :, None, None]
    y = (y - params["bn_mean"][None, :, None, None]) / jnp.sqrt(
        params["bn_var"] + eps)[None, :, None, None]
    y = y * params["bn_gamma"][None, :, None, None] + \
        params["bn_beta"][None, :, None, None]
    y = lax.conv_general_dilated(
        y, params["w_pw"], window_strides=(1, 1), padding="VALID",
        dimension_numbers=dn)
    return y + params["b_pw"][None, :, None, None]


if __name__ == "__main__":
    # Shapes consistent with DepthWise(dim_in=4, dim_out=8, kernel_size=3,
    # padding=1, stride=1, bias=True) applied to x of shape (2, 4, 16, 16).
    N, C, Cout, H, W = 2, 4, 8, 16, 16
    K, P, S = 3, 1, 1

    key = jax.random.PRNGKey(0)
    ks = jax.random.split(key, 8)
    params = {
        "w_dw": jax.random.normal(ks[0], (C, 1, K, K), jnp.float32) * 0.2,
        "b_dw": jax.random.normal(ks[1], (C,), jnp.float32) * 0.1,
        "bn_gamma": 1.0 + 0.1 * jax.random.normal(ks[2], (C,), jnp.float32),
        "bn_beta": 0.1 * jax.random.normal(ks[3], (C,), jnp.float32),
        "bn_mean": 0.1 * jax.random.normal(ks[4], (C,), jnp.float32),
        "bn_var": jnp.abs(jax.random.normal(ks[5], (C,), jnp.float32)) + 0.5,
        "w_pw": jax.random.normal(ks[6], (Cout, C, 1, 1), jnp.float32) * 0.2,
        "b_pw": jax.random.normal(ks[7], (Cout,), jnp.float32) * 0.1,
    }
    x = jax.random.normal(jax.random.PRNGKey(42), (N, C, H, W), jnp.float32)

    out = depthwise_forward(x, params, kernel_size=K, padding=P, stride=S)
    out = jax.block_until_ready(out)

    ref = _reference_forward(x, params, kernel_size=K, padding=P, stride=S)
    ref = jax.block_until_ready(ref)

    assert out.shape == ref.shape == (N, Cout, H, W)
    # bf16 matmul operands (f32 accumulation) -> loosened tolerance vs pure f32.
    max_err = float(jnp.max(jnp.abs(out - ref)))
    assert jnp.allclose(out, ref, atol=5e-2, rtol=5e-2), max_err
    print("KERNEL_OK")
</pallas_src>

<mosaic_0001>
module attributes {stable_mosaic.version = 11 : i64} {
  func.func @_depthwise_pointwise_kernel(%arg0: i32, %arg1: memref<1x16x16x4xf32, #tpu.memory_space<vmem>>, %arg2: memref<9x8x4xbf16, #tpu.memory_space<vmem>>, %arg3: memref<8x1xf32, #tpu.memory_space<vmem>>, %arg4: memref<1x8x256xf32, #tpu.memory_space<vmem>>, %arg5: memref<18x18x4xf32, #tpu.memory_space<vmem>>) attributes {dimension_semantics = [#tpu.dimension_semantics<parallel>], iteration_bounds = array<i64: 2>, scalar_prefetch = 0 : i64, scratch_operands = 1 : i64, tpu.core_type = #tpu.core_type<tc>, window_params = [{transform_indices = @transform_0, window_bounds = array<i64: 1, 16, 16, 4>}, {pipeline_mode = #tpu.pipeline_mode<synchronous>, transform_indices = @transform_1, window_bounds = array<i64: 9, 8, 4>}, {pipeline_mode = #tpu.pipeline_mode<synchronous>, transform_indices = @transform_2, window_bounds = array<i64: 8, 1>}, {transform_indices = @transform_3, window_bounds = array<i64: 1, 8, 256>}]} {
    %cst = arith.constant 0.000000e+00 : f32
    %0 = vector.broadcast %cst : f32 to vector<18x18x4xf32>
    %c0 = arith.constant 0 : index
    %c0_0 = arith.constant 0 : index
    %c0_1 = arith.constant 0 : index
    %1 = vector.load %arg5[%c0, %c0_0, %c0_1] : memref<18x18x4xf32, #tpu.memory_space<vmem>>, vector<18x18x4xf32>
    tpu.vector_store %arg5[%c0, %c0_0, %c0_1], %0 {strides = array<i32>} : memref<18x18x4xf32, #tpu.memory_space<vmem>>, vector<18x18x4xf32>,
    %c0_2 = arith.constant 0 : index
    %c0_3 = arith.constant 0 : index
    %c0_4 = arith.constant 0 : index
    %c0_5 = arith.constant 0 : index
    %2 = vector.load %arg1[%c0_2, %c0_3, %c0_4, %c0_5] : memref<1x16x16x4xf32, #tpu.memory_space<vmem>>, vector<1x16x16x4xf32>
    %3 = vector.shape_cast %2 : vector<1x16x16x4xf32> to vector<16x16x4xf32>
    %c1 = arith.constant 1 : index
    %c1_6 = arith.constant 1 : index
    %c0_7 = arith.constant 0 : index
    %4 = vector.load %arg5[%c1, %c1_6, %c0_7] : memref<18x18x4xf32, #tpu.memory_space<vmem>>, vector<16x16x4xf32>
    tpu.vector_store %arg5[%c1, %c1_6, %c0_7], %3 {strides = array<i32>} : memref<18x18x4xf32, #tpu.memory_space<vmem>>, vector<16x16x4xf32>,
    %cst_8 = arith.constant 0.000000e+00 : f32
    %5 = vector.broadcast %cst_8 : f32 to vector<8x256xf32>
    %c0_9 = arith.constant 0 : index
    %c0_10 = arith.constant 0 : index
    %c0_11 = arith.constant 0 : index
    %6 = vector.load %arg5[%c0_9, %c0_10, %c0_11] : memref<18x18x4xf32, #tpu.memory_space<vmem>>, vector<16x16x4xf32>
    %7 = vector.shape_cast %6 : vector<16x16x4xf32> to vector<256x4xf32>
    %8 = arith.truncf %7 : vector<256x4xf32> to vector<256x4xbf16>
    %c0_12 = arith.constant 0 : index
    %c0_13 = arith.constant 0 : index
    %c0_14 = arith.constant 0 : index
    %9 = vector.load %arg2[%c0_12, %c0_13, %c0_14] : memref<9x8x4xbf16, #tpu.memory_space<vmem>>, vector<1x8x4xbf16>
    %10 = vector.shape_cast %9 : vector<1x8x4xbf16> to vector<8x4xbf16>
    %cst_15 = arith.constant dense<0.000000e+00> : vector<8x256xf32>
    %11 = tpu.matmul %10, %8, %cst_15 {dimension_numbers = #tpu.dot_dimension_numbers<[1], [1], [0], [0], [0, 0, 1, 0], [], []>} : vector<8x4xbf16>, vector<256x4xbf16>, vector<8x256xf32> -> vector<8x256xf32>
    %12 = arith.addf %5, %11 : vector<8x256xf32>
    %c0_16 = arith.constant 0 : index
    %c1_17 = arith.constant 1 : index
    %c0_18 = arith.constant 0 : index
    %13 = vector.load %arg5[%c0_16, %c1_17, %c0_18] : memref<18x18x4xf32, #tpu.memory_space<vmem>>, vector<16x16x4xf32>
    %14 = vector.shape_cast %13 : vector<16x16x4xf32> to vector<256x4xf32>
    %15 = arith.truncf %14 : vector<256x4xf32> to vector<256x4xbf16>
    %c1_19 = arith.constant 1 : index
    %c0_20 = arith.constant 0 : index
    %c0_21 = arith.constant 0 : index
    %16 = vector.load %arg2[%c1_19, %c0_20, %c0_21] : memref<9x8x4xbf16, #tpu.memory_space<vmem>>, vector<1x8x4xbf16>
    %17 = vector.shape_cast %16 : vector<1x8x4xbf16> to vector<8x4xbf16>
    %cst_22 = arith.constant dense<0.000000e+00> : vector<8x256xf32>
    %18 = tpu.matmul %17, %15, %cst_22 {dimension_numbers = #tpu.dot_dimension_numbers<[1], [1], [0], [0], [0, 0, 1, 0], [], []>} : vector<8x4xbf16>, vector<256x4xbf16>, vector<8x256xf32> -> vector<8x256xf32>
    %19 = arith.addf %12, %18 : vector<8x256xf32>
    %c0_23 = arith.constant 0 : index
    %c2 = arith.constant 2 : index
    %c0_24 = arith.constant 0 : index
    %20 = vector.load %arg5[%c0_23, %c2, %c0_24] : memref<18x18x4xf32, #tpu.memory_space<vmem>>, vector<16x16x4xf32>
    %21 = vector.shape_cast %20 : vector<16x16x4xf32> to vector<256x4xf32>
    %22 = arith.truncf %21 : vector<256x4xf32> to vector<256x4xbf16>
    %c2_25 = arith.constant 2 : index
    %c0_26 = arith.constant 0 : index
    %c0_27 = arith.constant 0 : index
    %23 = vector.load %arg2[%c2_25, %c0_26, %c0_27] : memref<9x8x4xbf16, #tpu.memory_space<vmem>>, vector<1x8x4xbf16>
    %24 = vector.shape_cast %23 : vector<1x8x4xbf16> to vector<8x4xbf16>
    %cst_28 = arith.constant dense<0.000000e+00> : vector<8x256xf32>
    %25 = tpu.matmul %24, %22, %cst_28 {dimension_numbers = #tpu.dot_dimension_numbers<[1], [1], [0], [0], [0, 0, 1, 0], [], []>} : vector<8x4xbf16>, vector<256x4xbf16>, vector<8x256xf32> -> vector<8x256xf32>
    %26 = arith.addf %19, %25 : vector<8x256xf32>
    %c1_29 = arith.constant 1 : index
    %c0_30 = arith.constant 0 : index
    %c0_31 = arith.constant 0 : index
    %27 = vector.load %arg5[%c1_29, %c0_30, %c0_31] : memref<18x18x4xf32, #tpu.memory_space<vmem>>, vector<16x16x4xf32>
    %28 = vector.shape_cast %27 : vector<16x16x4xf32> to vector<256x4xf32>
    %29 = arith.truncf %28 : vector<256x4xf32> to vector<256x4xbf16>
    %c3 = arith.constant 3 : index
    %c0_32 = arith.constant 0 : index
    %c0_33 = arith.constant 0 : index
    %30 = vector.load %arg2[%c3, %c0_32, %c0_33] : memref<9x8x4xbf16, #tpu.memory_space<vmem>>, vector<1x8x4xbf16>
    %31 = vector.shape_cast %30 : vector<1x8x4xbf16> to vector<8x4xbf16>
    %cst_34 = arith.constant dense<0.000000e+00> : vector<8x256xf32>
    %32 = tpu.matmul %31, %29, %cst_34 {dimension_numbers = #tpu.dot_dimension_numbers<[1], [1], [0], [0], [0, 0, 1, 0], [], []>} : vector<8x4xbf16>, vector<256x4xbf16>, vector<8x256xf32> -> vector<8x256xf32>
    %33 = arith.addf %26, %32 : vector<8x256xf32>
    %c1_35 = arith.constant 1 : index
    %c1_36 = arith.constant 1 : index
    %c0_37 = arith.constant 0 : index
    %34 = vector.load %arg5[%c1_35, %c1_36, %c0_37] : memref<18x18x4xf32, #tpu.memory_space<vmem>>, vector<16x16x4xf32>
    %35 = vector.shape_cast %34 : vector<16x16x4xf32> to vector<256x4xf32>
    %36 = arith.truncf %35 : vector<256x4xf32> to vector<256x4xbf16>
    %c4 = arith.constant 4 : index
    %c0_38 = arith.constant 0 : index
    %c0_39 = arith.constant 0 : index
    %37 = vector.load %arg2[%c4, %c0_38, %c0_39] : memref<9x8x4xbf16, #tpu.memory_space<vmem>>, vector<1x8x4xbf16>
    %38 = vector.shape_cast %37 : vector<1x8x4xbf16> to vector<8x4xbf16>
    %cst_40 = arith.constant dense<0.000000e+00> : vector<8x256xf32>
    %39 = tpu.matmul %38, %36, %cst_40 {dimension_numbers = #tpu.dot_dimension_numbers<[1], [1], [0], [0], [0, 0, 1, 0], [], []>} : vector<8x4xbf16>, vector<256x4xbf16>, vector<8x256xf32> -> vector<8x256xf32>
    %40 = arith.addf %33, %39 : vector<8x256xf32>
    %c1_41 = arith.constant 1 : index
    %c2_42 = arith.constant 2 : index
    %c0_43 = arith.constant 0 : index
    %41 = vector.load %arg5[%c1_41, %c2_42, %c0_43] : memref<18x18x4xf32, #tpu.memory_space<vmem>>, vector<16x16x4xf32>
    %42 = vector.shape_cast %41 : vector<16x16x4xf32> to vector<256x4xf32>
    %43 = arith.truncf %42 : vector<256x4xf32> to vector<256x4xbf16>
    %c5 = arith.constant 5 : index
    %c0_44 = arith.constant 0 : index
    %c0_45 = arith.constant 0 : index
    %44 = vector.load %arg2[%c5, %c0_44, %c0_45] : memref<9x8x4xbf16, #tpu.memory_space<vmem>>, vector<1x8x4xbf16>
    %45 = vector.shape_cast %44 : vector<1x8x4xbf16> to vector<8x4xbf16>
    %cst_46 = arith.constant dense<0.000000e+00> : vector<8x256xf32>
    %46 = tpu.matmul %45, %43, %cst_46 {dimension_numbers = #tpu.dot_dimension_numbers<[1], [1], [0], [0], [0, 0, 1, 0], [], []>} : vector<8x4xbf16>, vector<256x4xbf16>, vector<8x256xf32> -> vector<8x256xf32>
    %47 = arith.addf %40, %46 : vector<8x256xf32>
    %c2_47 = arith.constant 2 : index
    %c0_48 = arith.constant 0 : index
    %c0_49 = arith.constant 0 : index
    %48 = vector.load %arg5[%c2_47, %c0_48, %c0_49] : memref<18x18x4xf32, #tpu.memory_space<vmem>>, vector<16x16x4xf32>
    %49 = vector.shape_cast %48 : vector<16x16x4xf32> to vector<256x4xf32>
    %50 = arith.truncf %49 : vector<256x4xf32> to vector<256x4xbf16>
    %c6 = arith.constant 6 : index
    %c0_50 = arith.constant 0 : index
    %c0_51 = arith.constant 0 : index
    %51 = vector.load %arg2[%c6, %c0_50, %c0_51] : memref<9x8x4xbf16, #tpu.memory_space<vmem>>, vector<1x8x4xbf16>
    %52 = vector.shape_cast %51 : vector<1x8x4xbf16> to vector<8x4xbf16>
    %cst_52 = arith.constant dense<0.000000e+00> : vector<8x256xf32>
    %53 = tpu.matmul %52, %50, %cst_52 {dimension_numbers = #tpu.dot_dimension_numbers<[1], [1], [0], [0], [0, 0, 1, 0], [], []>} : vector<8x4xbf16>, vector<256x4xbf16>, vector<8x256xf32> -> vector<8x256xf32>
    %54 = arith.addf %47, %53 : vector<8x256xf32>
    %c2_53 = arith.constant 2 : index
    %c1_54 = arith.constant 1 : index
    %c0_55 = arith.constant 0 : index
    %55 = vector.load %arg5[%c2_53, %c1_54, %c0_55] : memref<18x18x4xf32, #tpu.memory_space<vmem>>, vector<16x16x4xf32>
    %56 = vector.shape_cast %55 : vector<16x16x4xf32> to vector<256x4xf32>
    %57 = arith.truncf %56 : vector<256x4xf32> to vector<256x4xbf16>
    %c7 = arith.constant 7 : index
    %c0_56 = arith.constant 0 : index
    %c0_57 = arith.constant 0 : index
    %58 = vector.load %arg2[%c7, %c0_56, %c0_57] : memref<9x8x4xbf16, #tpu.memory_space<vmem>>, vector<1x8x4xbf16>
    %59 = vector.shape_cast %58 : vector<1x8x4xbf16> to vector<8x4xbf16>
    %cst_58 = arith.constant dense<0.000000e+00> : vector<8x256xf32>
    %60 = tpu.matmul %59, %57, %cst_58 {dimension_numbers = #tpu.dot_dimension_numbers<[1], [1], [0], [0], [0, 0, 1, 0], [], []>} : vector<8x4xbf16>, vector<256x4xbf16>, vector<8x256xf32> -> vector<8x256xf32>
    %61 = arith.addf %54, %60 : vector<8x256xf32>
    %c2_59 = arith.constant 2 : index
    %c2_60 = arith.constant 2 : index
    %c0_61 = arith.constant 0 : index
    %62 = vector.load %arg5[%c2_59, %c2_60, %c0_61] : memref<18x18x4xf32, #tpu.memory_space<vmem>>, vector<16x16x4xf32>
    %63 = vector.shape_cast %62 : vector<16x16x4xf32> to vector<256x4xf32>
    %64 = arith.truncf %63 : vector<256x4xf32> to vector<256x4xbf16>
    %c8 = arith.constant 8 : index
    %c0_62 = arith.constant 0 : index
    %c0_63 = arith.constant 0 : index
    %65 = vector.load %arg2[%c8, %c0_62, %c0_63] : memref<9x8x4xbf16, #tpu.memory_space<vmem>>, vector<1x8x4xbf16>
    %66 = vector.shape_cast %65 : vector<1x8x4xbf16> to vector<8x4xbf16>
    %cst_64 = arith.constant dense<0.000000e+00> : vector<8x256xf32>
    %67 = tpu.matmul %66, %64, %cst_64 {dimension_numbers = #tpu.dot_dimension_numbers<[1], [1], [0], [0], [0, 0, 1, 0], [], []>} : vector<8x4xbf16>, vector<256x4xbf16>, vector<8x256xf32> -> vector<8x256xf32>
    %68 = arith.addf %61, %67 : vector<8x256xf32>
    %c0_65 = arith.constant 0 : index
    %c0_66 = arith.constant 0 : index
    %69 = vector.load %arg3[%c0_65, %c0_66] : memref<8x1xf32, #tpu.memory_space<vmem>>, vector<8x1xf32>
    %70 = vector.broadcast %69 : vector<8x1xf32> to vector<8x256xf32>
    %71 = arith.addf %68, %70 : vector<8x256xf32>
    %c0_67 = arith.constant 0 : index
    %c0_68 = arith.constant 0 : index
    %c0_69 = arith.constant 0 : index
    %72 = vector.load %arg4[%c0_67, %c0_68, %c0_69] : memref<1x8x256xf32, #tpu.memory_space<vmem>>, vector<1x8x256xf32>
    %73 = vector.shape_cast %72 : vector<1x8x256xf32> to vector<8x256xf32>
    %74 = vector.shape_cast %71 : vector<8x256xf32> to vector<1x8x256xf32>
    tpu.vector_store %arg4[%c0_67, %c0_68, %c0_69], %74 {strides = array<i32>} : memref<1x8x256xf32, #tpu.memory_space<vmem>>, vector<1x8x256xf32>,
    return
  }
  func.func @transform_0(%arg0: i32) -> (i32, i32, i32, i32) {
    %c0_i32 = arith.constant 0 : i32
    %c0_i32_0 = arith.constant 0 : i32
    %c0_i32_1 = arith.constant 0 : i32
    %c0_i32_2 = arith.constant 0 : i32
    return %arg0, %c0_i32, %c0_i32_0, %c0_i32_1 : i32, i32, i32, i32
  }
  func.func @transform_1(%arg0: i32) -> (i32, i32, i32) {
    %c0_i32 = arith.constant 0 : i32
    %c0_i32_0 = arith.constant 0 : i32
    %c0_i32_1 = arith.constant 0 : i32
    %c0_i32_2 = arith.constant 0 : i32
    return %c0_i32, %c0_i32_0, %c0_i32_1 : i32, i32, i32
  }
  func.func @transform_2(%arg0: i32) -> (i32, i32) {
    %c0_i32 = arith.constant 0 : i32
    %c0_i32_0 = arith.constant 0 : i32
    %c0_i32_1 = arith.constant 0 : i32
    return %c0_i32, %c0_i32_0 : i32, i32
  }
  func.func @transform_3(%arg0: i32) -> (i32, i32, i32) {
    %c0_i32 = arith.constant 0 : i32
    %c0_i32_0 = arith.constant 0 : i32
    %c0_i32_1 = arith.constant 0 : i32
    return %arg0, %c0_i32, %c0_i32_0 : i32, i32, i32
  }
}

</mosaic_0001>

<llo_original>
// kernel: tpu_custom_call.1
$region0: #{tpu_custom_call.1}
  #allocation0 [shape = 'u32[]', space=smem, size = 0x4, offset = 0x4, fixed_abs, tag = 'smem constant byte address 0x4 - core index']
  #allocation1 [shape = 'u32[144,128]{1,0:T(1,128)}', space=vmem, size = 0x12000, scoped, tag = 'internal scratch']
  #allocation2 [shape = 'f32[18,18,4]{2,1,0:T(8,128)}', space=vmem, size = 0x36000, scoped, tag = 'scratch operand']
  %s0 = inlined_call_operand.vmem [shape: f32[2,16,16,4], index: 0, kind: input, shape index: {}]
  %s1 = inlined_call_operand.vmem [shape: bf16[9,8,4], index: 1, kind: input, shape index: {}]
  %s2 = inlined_call_operand.vmem [shape: f32[8,1], index: 2, kind: input, shape index: {}]
  %s3 = inlined_call_operand.hbm [shape: f32[2,8,256], index: 3, kind: output, shape index: {}]
  %s4 = sld [smem:[#allocation0]]
  $region45: #{tpu_custom_call.1} parent=0
    _
  %s6 = ssub.s32 1, %s4
  %s7 = scalar_select 0, %s6, %s4
  $region1: #{tpu_custom_call.1} parent=0
    #allocation3 [shape = 'u8[16384]{0}', space=vmem, size = 0x4000, scoped, tag = 'output window, operand 0']
    #allocation4 [shape = 's32[2]{0}', space=sflag, size = 0x8, scoped, tag = 'scoped memory for tpu_custom_call.1']
    %8 = vsyncpa [#allocation4], 0
    %s9 = scalar_lea.sflag [#allocation4], 1
    %10 = vsyncpa %s9, 0
    loop: start=0, step=1, limit=4
    $region2: #{tpu_custom_call.1} parent=1 // loop_pre_header
      _
    $region3: #{tpu_custom_call.1} parent=1 // loop_header
      %s12 = sphi 0, %s16
      %p13 = scmp.ge.s32.totalorder %s12, 4
      %s22 = sphi 0, %s24
      %s25 = sphi 0, %s22
      %s26 = sphi 0, %s25
      %s42 = sphi 0, %s26
      %s46 = sphi 0, %s46
      %s48 = sphi 0, %s46
      %s49 = sphi 0, %s48
      %s63 = sphi 0, %s49
      %s67 = sphi 0, %s67
      %s69 = sphi 0, %s67
      %s70 = sphi 0, %s69
      %s84 = sphi 0, %s70
      %s90 = sphi 0, %s92
      %s93 = sphi 0, %s90
      %s94 = sphi 0, %s93
      %s110 = sphi 0, %s94
    $region4: #{tpu_custom_call.1} parent=1 // loop_header_branch
      %15 = sbr.rel (%p13) target = $region8
    $region5: #{tpu_custom_call.1} parent=1 // loop_body
      %s17 = ssub.s32 %s12, 1
      %s18 = ssub.s32 %s12, 2
      %s19 = sadd.s32 %s12, 1
      %s20 = ssub.s32 %s12, %s19
      %p21 = scmp.eq.s32.totalorder %s20, 0
      %s23 = sadd.s32 %s22, 1
      %s24 = scalar_select %p21, %s22, %s23
      %p27 = pneg %p21
      %p28 = scmp.eq.s32.totalorder %s12, 1
      %p29 = por %p27, %p28
      %p30 = scmp.ne.s32.totalorder %s22, %s25
      %p31 = scmp.eq.s32.totalorder %s12, 0
      %p32 = por %p30, %p31
      %p33 = scmp.ne.s32.totalorder %s22, %s25
      %p34 = scmp.eq.s32.totalorder %s17, 1
      %p35 = por %p33, %p34
      %p36 = scmp.ne.s32.totalorder %s25, %s26
      %p37 = scmp.eq.s32.totalorder %s17, 0
      %p38 = por %p36, %p37
      %p39 = scmp.ne.s32.totalorder %s25, %s26
      %p40 = scmp.eq.s32.totalorder %s18, 1
      %p41 = por %p39, %p40
      %p43 = scmp.ne.s32.totalorder %s26, %s42
      %p44 = scmp.eq.s32.totalorder %s18, 0
      %p45 = por %p43, %p44
      %s47 = sadd.s32 %s46, 1
      %p50 = scmp.eq.s32.totalorder %s12, 1
      %p51 = scmp.ne.s32.totalorder %s46, %s48
      %p52 = scmp.eq.s32.totalorder %s12, 0
      %p53 = por %p51, %p52
      %p54 = scmp.ne.s32.totalorder %s46, %s48
      %p55 = scmp.eq.s32.totalorder %s17, 1
      %p56 = por %p54, %p55
      %p57 = scmp.ne.s32.totalorder %s48, %s49
      %p58 = scmp.eq.s32.totalorder %s17, 0
      %p59 = por %p57, %p58
      %p60 = scmp.ne.s32.totalorder %s48, %s49
      %p61 = scmp.eq.s32.totalorder %s18, 1
      %p62 = por %p60, %p61
      %p64 = scmp.ne.s32.totalorder %s49, %s63
      %p65 = scmp.eq.s32.totalorder %s18, 0
      %p66 = por %p64, %p65
      %s68 = sadd.s32 %s67, 1
      %p71 = scmp.eq.s32.totalorder %s12, 1
      %p72 = scmp.ne.s32.totalorder %s67, %s69
      %p73 = scmp.eq.s32.totalorder %s12, 0
      %p74 = por %p72, %p73
      %p75 = scmp.ne.s32.totalorder %s67, %s69
      %p76 = scmp.eq.s32.totalorder %s17, 1
      %p77 = por %p75, %p76
      %p78 = scmp.ne.s32.totalorder %s69, %s70
      %p79 = scmp.eq.s32.totalorder %s17, 0
      %p80 = por %p78, %p79
      %p81 = scmp.ne.s32.totalorder %s69, %s70
      %p82 = scmp.eq.s32.totalorder %s18, 1
      %p83 = por %p81, %p82
      %p85 = scmp.ne.s32.totalorder %s70, %s84
      %p86 = scmp.eq.s32.totalorder %s18, 0
      %p87 = por %p85, %p86
      %s88 = ssub.s32 %s12, %s19
      %p89 = scmp.eq.s32.totalorder %s88, 0
      %s91 = sadd.s32 %s90, 1
      %s92 = scalar_select %p89, %s90, %s91
      %p95 = pneg %p89
      %p96 = scmp.eq.s32.totalorder %s12, 1
      %p97 = por %p95, %p96
      %p98 = scmp.ne.s32.totalorder %s90, %s93
      %p99 = scmp.eq.s32.totalorder %s12, 0
      %p100 = por %p98, %p99
      %p101 = scmp.ne.s32.totalorder %s90, %s93
      %p102 = scmp.eq.s32.totalorder %s17, 1
      %p103 = por %p101, %p102
      %p104 = scmp.ne.s32.totalorder %s93, %s94
      %p105 = scmp.eq.s32.totalorder %s17, 0
      %p106 = por %p104, %p105
      %p107 = scmp.ne.s32.totalorder %s93, %s94
      %p108 = scmp.eq.s32.totalorder %s18, 1
      %p109 = por %p107, %p108
      %p111 = scmp.ne.s32.totalorder %s94, %s110
      %p112 = scmp.eq.s32.totalorder %s18, 0
      %p113 = por %p111, %p112
      %p114 = scmp.le.s32.totalorder 1, %s12
      %p115 = scmp.lt.s32.totalorder %s12, 3
      %p116 = pnand %p114, %p115
      %p117 = pneg %p116
      // Predicated region
      $region9: #{tpu_custom_call.1} parent=5 // pred_check
        _
      $region10: #{tpu_custom_call.1} parent=5 // pred_check_branch
        %119 = sbr.rel (%p116) target = $region12
      $region11: #{tpu_custom_call.1} parent=5 // pred_region
        %s120 = ssub.s32 %s12, 1
        // Predicated region
        $region13: #{tpu_custom_call.1} parent=11 // pred_check
          %p121 = pneg %p59
        $region14: #{tpu_custom_call.1} parent=11 // pred_check_branch
          %123 = sbr.rel (%p121) target = $region16
        $region15: #{tpu_custom_call.1} parent=11 // pred_region
          _
        $region16: #{tpu_custom_call.1} parent=11 // pred_fallthru
          _
        // Predicated region
        $region17: #{tpu_custom_call.1} parent=11 // pred_check
          %p124 = pneg %p80
        $region18: #{tpu_custom_call.1} parent=11 // pred_check_branch
          %126 = sbr.rel (%p124) target = $region20
        $region19: #{tpu_custom_call.1} parent=11 // pred_region
          _
        $region20: #{tpu_custom_call.1} parent=11 // pred_fallthru
          _
      $region12: #{tpu_custom_call.1} parent=5 // pred_fallthru
        _
      %p127 = scmp.lt.s32.totalorder %s12, 2
      // Predicated region
      $region21: #{tpu_custom_call.1} parent=5 // pred_check
        %p128 = pneg %p127
      $region22: #{tpu_custom_call.1} parent=5 // pred_check_branch
        %130 = sbr.rel (%p128) target = $region24
      $region23: #{tpu_custom_call.1} parent=5 // pred_region
        // Predicated region
        $region25: #{tpu_custom_call.1} parent=23 // pred_check
          %p131 = pneg %p32
        $region26: #{tpu_custom_call.1} parent=23 // pred_check_branch
          %133 = sbr.rel (%p131) target = $region28
        $region27: #{tpu_custom_call.1} parent=23 // pred_region
          %p134 = scmp.lt.s32.totalorder %s12, 1
          %s135 = scalar_select %p134, %s12, 1
          %s136 = smul.addr %s135, 32
          %s137 = smul.addr %s136, 8
          %s138 = scalar_lea.vmem %s0, %s137
        $region28: #{tpu_custom_call.1} parent=23 // pred_fallthru
          _
      $region24: #{tpu_custom_call.1} parent=5 // pred_fallthru
        _
      %p139 = scmp.le.s32.totalorder 1, %s12
      %p140 = scmp.lt.s32.totalorder %s12, 3
      %p141 = pnand %p139, %p140
      %p142 = pneg %p141
      // Predicated region
      $region29: #{tpu_custom_call.1} parent=5 // pred_check
        _
      $region30: #{tpu_custom_call.1} parent=5 // pred_check_branch
        %144 = sbr.rel (%p141) target = $region32
      $region31: #{tpu_custom_call.1} parent=5 // pred_region
        %s145 = ssub.s32 %s12, 1
        %p146 = scmp.lt.s32.totalorder %s17, 1
        %s147 = scalar_select %p146, %s17, 1
        %s148 = smul.addr %s147, 32
        %s149 = smul.addr %s148, 8
        %s150 = scalar_lea.vmem %s0, %s149
        %p151 = pneg %p38
        %p152 = pneg %p35
        %p153 = pneg %p59
        %p154 = pneg %p56
        %p155 = pneg %p80
        %p156 = pneg %p77
        %p157 = pneg %p106
        %p158 = pneg %p103
        %s159 = sand.u32 %s93, 1
        %s160 = scalar_lea.sflag [#allocation4], %s159
        %s161 = sand.u32 %s93, 1
        %s162 = smul.addr %s161, 16
        %s163 = scalar_lea.vmem [#allocation3], %s162
        %p164 = scmp.lt.s32.totalorder %s17, 1
        %s165 = scalar_select %p164, %s17, 1
        %s166 = smul.addr %s165, 32
        %s167 = smul.addr %s166, 8
        %s168 = scalar_lea.vmem %s0, %s167
        %vm170 = vcmask 31744
        %171 = vst.msk [vmem:[#allocation2] sm:$0xff] %vm170, 0.0
        %172 = vst.msk [vmem:[#allocation2 + $0x8] sm:$0xff] %vm170, 0.0
        %vm173 = vcmask 25600
        %174 = vst.msk [vmem:[#allocation2 + $0x10] sm:$0x3] %vm173, 0.0
        %175 = vst.msk [vmem:[#allocation2 + $0x18] sm:$0xff] %vm170, 0.0
        %176 = vst.msk [vmem:[#allocation2 + $0x20] sm:$0xff] %vm170, 0.0
        %177 = vst.msk [vmem:[#allocation2 + $0x28] sm:$0x3] %vm173, 0.0
        %178 = vst.msk [vmem:[#allocation2 + $0x30] sm:$0xff] %vm170, 0.0
        %179 = vst.msk [vmem:[#allocation2 + $0x38] sm:$0xff] %vm170, 0.0
        %180 = vst.msk [vmem:[#allocation2 + $0x40] sm:$0x3] %vm173, 0.0
        %181 = vst.msk [vmem:[#allocation2 + $0x48] sm:$0xff] %vm170, 0.0
        %182 = vst.msk [vmem:[#allocation2 + $0x50] sm:$0xff] %vm170, 0.0
        %183 = vst.msk [vmem:[#allocation2 + $0x58] sm:$0x3] %vm173, 0.0
        %184 = vst.msk [vmem:[#allocation2 + $0x60] sm:$0xff] %vm170, 0.0
        %185 = vst.msk [vmem:[#allocation2 + $0x68] sm:$0xff] %vm170, 0.0
        %186 = vst.msk [vmem:[#allocation2 + $0x70] sm:$0x3] %vm173, 0.0
        %187 = vst.msk [vmem:[#allocation2 + $0x78] sm:$0xff] %vm170, 0.0
        %188 = vst.msk [vmem:[#allocation2 + $0x80] sm:$0xff] %vm170, 0.0
        %189 = vst.msk [vmem:[#allocation2 + $0x88] sm:$0x3] %vm173, 0.0
        %190 = vst.msk [vmem:[#allocation2 + $0x90] sm:$0xff] %vm170, 0.0
        %191 = vst.msk [vmem:[#allocation2 + $0x98] sm:$0xff] %vm170, 0.0
        %192 = vst.msk [vmem:[#allocation2 + $0xa0] sm:$0x3] %vm173, 0.0
        %193 = vst.msk [vmem:[#allocation2 + $0xa8] sm:$0xff] %vm170, 0.0
        %194 = vst.msk [vmem:[#allocation2 + $0xb0] sm:$0xff] %vm170, 0.0
        %195 = vst.msk [vmem:[#allocation2 + $0xb8] sm:$0x3] %vm173, 0.0
        %196 = vst.msk [vmem:[#allocation2 + $0xc0] sm:$0xff] %vm170, 0.0
        %197 = vst.msk [vmem:[#allocation2 + $0xc8] sm:$0xff] %vm170, 0.0
        %198 = vst.msk [vmem:[#allocation2 + $0xd0] sm:$0x3] %vm173, 0.0
        %199 = vst.msk [vmem:[#allocation2 + $0xd8] sm:$0xff] %vm170, 0.0
        %200 = vst.msk [vmem:[#allocation2 + $0xe0] sm:$0xff] %vm170, 0.0
        %201 = vst.msk [vmem:[#allocation2 + $0xe8] sm:$0x3] %vm173, 0.0
        %202 = vst.msk [vmem:[#allocation2 + $0xf0] sm:$0xff] %vm170, 0.0
        %203 = vst.msk [vmem:[#allocation2 + $0xf8] sm:$0xff] %vm170, 0.0
        %204 = vst.msk [vmem:[#allocation2 + $0x100] sm:$0x3] %vm173, 0.0
        %205 = vst.msk [vmem:[#allocation2 + $0x108] sm:$0xff] %vm170, 0.0
        %206 = vst.msk [vmem:[#allocation2 + $0x110] sm:$0xff] %vm170, 0.0
        %207 = vst.msk [vmem:[#allocation2 + $0x118] sm:$0x3] %vm173, 0.0
        %208 = vst.msk [vmem:[#allocation2 + $0x120] sm:$0xff] %vm170, 0.0
        %209 = vst.msk [vmem:[#allocation2 + $0x128] sm:$0xff] %vm170, 0.0
        %210 = vst.msk [vmem:[#allocation2 + $0x130] sm:$0x3] %vm173, 0.0
        %211 = vst.msk [vmem:[#allocation2 + $0x138] sm:$0xff] %vm170, 0.0
        %212 = vst.msk [vmem:[#allocation2 + $0x140] sm:$0xff] %vm170, 0.0
        %213 = vst.msk [vmem:[#allocation2 + $0x148] sm:$0x3] %vm173, 0.0
        %214 = vst.msk [vmem:[#allocation2 + $0x150] sm:$0xff] %vm170, 0.0
        %215 = vst.msk [vmem:[#allocation2 + $0x158] sm:$0xff] %vm170, 0.0
        %216 = vst.msk [vmem:[#allocation2 + $0x160] sm:$0x3] %vm173, 0.0
        %217 = vst.msk [vmem:[#allocation2 + $0x168] sm:$0xff] %vm170, 0.0
        %218 = vst.msk [vmem:[#allocation2 + $0x170] sm:$0xff] %vm170, 0.0
        %219 = vst.msk [vmem:[#allocation2 + $0x178] sm:$0x3] %vm173, 0.0
        %220 = vst.msk [vmem:[#allocation2 + $0x180] sm:$0xff] %vm170, 0.0
        %221 = vst.msk [vmem:[#allocation2 + $0x188] sm:$0xff] %vm170, 0.0
        %222 = vst.msk [vmem:[#allocation2 + $0x190] sm:$0x3] %vm173, 0.0
        %223 = vst.msk [vmem:[#allocation2 + $0x198] sm:$0xff] %vm170, 0.0
        %224 = vst.msk [vmem:[#allocation2 + $0x1a0] sm:$0xff] %vm170, 0.0
        %225 = vst.msk [vmem:[#allocation2 + $0x1a8] sm:$0x3] %vm173, 0.0
        %v226 = vld [vmem:[%s168] sm:$0xff]
        %v227 = vld [vmem:[%s168 + $0x8] sm:$0xff]
        %v228 = vld [vmem:[%s168 + $0x10] sm:$0xff]
        %v229 = vld [vmem:[%s168 + $0x18] sm:$0xff]
        %v230 = vld [vmem:[%s168 + $0x20] sm:$0xff]
        %v231 = vld [vmem:[%s168 + $0x28] sm:$0xff]
        %v232 = vld [vmem:[%s168 + $0x30] sm:$0xff]
        %v233 = vld [vmem:[%s168 + $0x38] sm:$0xff]
        %v234 = vld [vmem:[%s168 + $0x40] sm:$0xff]
        %v235 = vld [vmem:[%s168 + $0x48] sm:$0xff]
        %v236 = vld [vmem:[%s168 + $0x50] sm:$0xff]
        %v237 = vld [vmem:[%s168 + $0x58] sm:$0xff]
        %v238 = vld [vmem:[%s168 + $0x60] sm:$0xff]
        %v239 = vld [vmem:[%s168 + $0x68] sm:$0xff]
        %v240 = vld [vmem:[%s168 + $0x70] sm:$0xff]
        %v241 = vld [vmem:[%s168 + $0x78] sm:$0xff]
        %v242 = vld [vmem:[%s168 + $0x80] sm:$0xff]
        %v243 = vld [vmem:[%s168 + $0x88] sm:$0xff]
        %v244 = vld [vmem:[%s168 + $0x90] sm:$0xff]
        %v245 = vld [vmem:[%s168 + $0x98] sm:$0xff]
        %v246 = vld [vmem:[%s168 + $0xa0] sm:$0xff]
        %v247 = vld [vmem:[%s168 + $0xa8] sm:$0xff]
        %v248 = vld [vmem:[%s168 + $0xb0] sm:$0xff]
        %v249 = vld [vmem:[%s168 + $0xb8] sm:$0xff]
        %v250 = vld [vmem:[%s168 + $0xc0] sm:$0xff]
        %v251 = vld [vmem:[%s168 + $0xc8] sm:$0xff]
        %v252 = vld [vmem:[%s168 + $0xd0] sm:$0xff]
        %v253 = vld [vmem:[%s168 + $0xd8] sm:$0xff]
        %v254 = vld [vmem:[%s168 + $0xe0] sm:$0xff]
        %v255 = vld [vmem:[%s168 + $0xe8] sm:$0xff]
        %v256 = vld [vmem:[%s168 + $0xf0] sm:$0xff]
        %v257 = vld [vmem:[%s168 + $0xf8] sm:$0xff]
        %s258 = scalar_lea.vmem [#allocation2], 24
        %259 = vst.msk [vmem:[%s258 + $0x1] sm:$0xff] %vm170, %v226
        %260 = vst.msk [vmem:[%s258 + $0x9] sm:$0xff] %vm170, %v227
        %261 = vst.msk [vmem:[%s258 + $0x19] sm:$0xff] %vm170, %v228
        %262 = vst.msk [vmem:[%s258 + $0x21] sm:$0xff] %vm170, %v229
        %263 = vst.msk [vmem:[%s258 + $0x31] sm:$0xff] %vm170, %v230
        %264 = vst.msk [vmem:[%s258 + $0x39] sm:$0xff] %vm170, %v231
        %265 = vst.msk [vmem:[%s258 + $0x49] sm:$0xff] %vm170, %v232
        %266 = vst.msk [vmem:[%s258 + $0x51] sm:$0xff] %vm170, %v233
        %267 = vst.msk [vmem:[%s258 + $0x61] sm:$0xff] %vm170, %v234
        %268 = vst.msk [vmem:[%s258 + $0x69] sm:$0xff] %vm170, %v235
        %269 = vst.msk [vmem:[%s258 + $0x79] sm:$0xff] %vm170, %v236
        %270 = vst.msk [vmem:[%s258 + $0x81] sm:$0xff] %vm170, %v237
        %271 = vst.msk [vmem:[%s258 + $0x91] sm:$0xff] %vm170, %v238
        %272 = vst.msk [vmem:[%s258 + $0x99] sm:$0xff] %vm170, %v239
        %273 = vst.msk [vmem:[%s258 + $0xa9] sm:$0xff] %vm170, %v240
        %274 = vst.msk [vmem:[%s258 + $0xb1] sm:$0xff] %vm170, %v241
        %275 = vst.msk [vmem:[%s258 + $0xc1] sm:$0xff] %vm170, %v242
        %276 = vst.msk [vmem:[%s258 + $0xc9] sm:$0xff] %vm170, %v243
        %277 = vst.msk [vmem:[%s258 + $0xd9] sm:$0xff] %vm170, %v244
        %278 = vst.msk [vmem:[%s258 + $0xe1] sm:$0xff] %vm170, %v245
        %279 = vst.msk [vmem:[%s258 + $0xf1] sm:$0xff] %vm170, %v246
        %280 = vst.msk [vmem:[%s258 + $0xf9] sm:$0xff] %vm170, %v247
        %281 = vst.msk [vmem:[%s258 + $0x109] sm:$0xff] %vm170, %v248
        %282 = vst.msk [vmem:[%s258 + $0x111] sm:$0xff] %vm170, %v249
        %283 = vst.msk [vmem:[%s258 + $0x121] sm:$0xff] %vm170, %v250
        %284 = vst.msk [vmem:[%s258 + $0x129] sm:$0xff] %vm170, %v251
        %285 = vst.msk [vmem:[%s258 + $0x139] sm:$0xff] %vm170, %v252
        %286 = vst.msk [vmem:[%s258 + $0x141] sm:$0xff] %vm170, %v253
        %287 = vst.msk [vmem:[%s258 + $0x151] sm:$0xff] %vm170, %v254
        %288 = vst.msk [vmem:[%s258 + $0x159] sm:$0xff] %vm170, %v255
        %289 = vst.msk [vmem:[%s258 + $0x169] sm:$0xff] %vm170, %v256
        %290 = vst.msk [vmem:[%s258 + $0x171] sm:$0xff] %vm170, %v257
        %v291 = vld [vmem:[#allocation2] sm:$0xff]
        %v292 = vld [vmem:[#allocation2 + $0x8] sm:$0xff]
        %v293 = vld [vmem:[#allocation2 + $0x18] sm:$0xff]
        %v294 = vld [vmem:[#allocation2 + $0x20] sm:$0xff]
        %v295 = vld [vmem:[#allocation2 + $0x30] sm:$0xff]
        %v296 = vld [vmem:[#allocation2 + $0x38] sm:$0xff]
        %v297 = vld [vmem:[#allocation2 + $0x48] sm:$0xff]
        %v298 = vld [vmem:[#allocation2 + $0x50] sm:$0xff]
        %v299 = vld [vmem:[#allocation2 + $0x60] sm:$0xff]
        %v300 = vld [vmem:[#allocation2 + $0x68] sm:$0xff]
        %v301 = vld [vmem:[#allocation2 + $0x78] sm:$0xff]
        %v302 = vld [vmem:[#allocation2 + $0x80] sm:$0xff]
        %v303 = vld [vmem:[#allocation2 + $0x90] sm:$0xff]
        %v304 = vld [vmem:[#allocation2 + $0x98] sm:$0xff]
        %v305 = vld [vmem:[#allocation2 + $0xa8] sm:$0xff]
        %v306 = vld [vmem:[#allocation2 + $0xb0] sm:$0xff]
        %v307 = vld [vmem:[#allocation2 + $0xc0] sm:$0xff]
        %v308 = vld [vmem:[#allocation2 + $0xc8] sm:$0xff]
        %v309 = vld [vmem:[#allocation2 + $0xd8] sm:$0xff]
        %v310 = vld [vmem:[#allocation2 + $0xe0] sm:$0xff]
        %v311 = vld [vmem:[#allocation2 + $0xf0] sm:$0xff]
        %v312 = vld [vmem:[#allocation2 + $0xf8] sm:$0xff]
        %v313 = vld [vmem:[#allocation2 + $0x108] sm:$0xff]
        %v314 = vld [vmem:[#allocation2 + $0x110] sm:$0xff]
        %v315 = vld [vmem:[#allocation2 + $0x120] sm:$0xff]
        %v316 = vld [vmem:[#allocation2 + $0x128] sm:$0xff]
        %v317 = vld [vmem:[#allocation2 + $0x138] sm:$0xff]
        %v318 = vld [vmem:[#allocation2 + $0x140] sm:$0xff]
        %v319 = vld [vmem:[#allocation2 + $0x150] sm:$0xff]
        %v320 = vld [vmem:[#allocation2 + $0x158] sm:$0xff]
        %v321 = vld [vmem:[#allocation2 + $0x168] sm:$0xff]
        %v322 = vld [vmem:[#allocation2 + $0x170] sm:$0xff]
        %v323 = vpack.c.bf16 %v292, %v291
        %v324 = vpack.c.bf16 %v294, %v293
        %v325 = vpack.c.bf16 %v296, %v295
        %v326 = vpack.c.bf16 %v298, %v297
        %v327 = vpack.c.bf16 %v300, %v299
        %v328 = vpack.c.bf16 %v302, %v301
        %v329 = vpack.c.bf16 %v304, %v303
        %v330 = vpack.c.bf16 %v306, %v305
        %v331 = vpack.c.bf16 %v308, %v307
        %v332 = vpack.c.bf16 %v310, %v309
        %v333 = vpack.c.bf16 %v312, %v311
        %v334 = vpack.c.bf16 %v314, %v313
        %v335 = vpack.c.bf16 %v316, %v315
        %v336 = vpack.c.bf16 %v318, %v317
        %v337 = vpack.c.bf16 %v320, %v319
        %v338 = vpack.c.bf16 %v322, %v321
        %v339 = vld [vmem:[%s1] sm:$0xf]
        %v340 = vld [vmem:[#allocation2 + $0x1] sm:$0xff]
        %v341 = vld [vmem:[#allocation2 + $0x9] sm:$0xff]
        %v342 = vld [vmem:[#allocation2 + $0x19] sm:$0xff]
        %v343 = vld [vmem:[#allocation2 + $0x21] sm:$0xff]
        %v344 = vld [vmem:[#allocation2 + $0x31] sm:$0xff]
        %v345 = vld [vmem:[#allocation2 + $0x39] sm:$0xff]
        %v346 = vld [vmem:[#allocation2 + $0x49] sm:$0xff]
        %v347 = vld [vmem:[#allocation2 + $0x51] sm:$0xff]
        %v348 = vld [vmem:[#allocation2 + $0x61] sm:$0xff]
        %v349 = vld [vmem:[#allocation2 + $0x69] sm:$0xff]
        %v350 = vld [vmem:[#allocation2 + $0x79] sm:$0xff]
        %v351 = vld [vmem:[#allocation2 + $0x81] sm:$0xff]
        %v352 = vld [vmem:[#allocation2 + $0x91] sm:$0xff]
        %v353 = vld [vmem:[#allocation2 + $0x99] sm:$0xff]
        %v354 = vld [vmem:[#allocation2 + $0xa9] sm:$0xff]
        %v355 = vld [vmem:[#allocation2 + $0xb1] sm:$0xff]
        %v356 = vld [vmem:[#allocation2 + $0xc1] sm:$0xff]
        %v357 = vld [vmem:[#allocation2 + $0xc9] sm:$0xff]
        %v358 = vld [vmem:[#allocation2 + $0xd9] sm:$0xff]
        %v359 = vld [vmem:[#allocation2 + $0xe1] sm:$0xff]
        %v360 = vld [vmem:[#allocation2 + $0xf1] sm:$0xff]
        %v361 = vld [vmem:[#allocation2 + $0xf9] sm:$0xff]
        %v362 = vld [vmem:[#allocation2 + $0x109] sm:$0xff]
        %v363 = vld [vmem:[#allocation2 + $0x111] sm:$0xff]
        %v364 = vld [vmem:[#allocation2 + $0x121] sm:$0xff]
        %v365 = vld [vmem:[#allocation2 + $0x129] sm:$0xff]
        %v366 = vld [vmem:[#allocation2 + $0x139] sm:$0xff]
        %v367 = vld [vmem:[#allocation2 + $0x141] sm:$0xff]
        %v368 = vld [vmem:[#allocation2 + $0x151] sm:$0xff]
        %v369 = vld [vmem:[#allocation2 + $0x159] sm:$0xff]
        %v370 = vld [vmem:[#allocation2 + $0x169] sm:$0xff]
        %v371 = vld [vmem:[#allocation2 + $0x171] sm:$0xff]
        %v372 = vpack.c.bf16 %v341, %v340
        %v373 = vpack.c.bf16 %v343, %v342
        %v374 = vpack.c.bf16 %v345, %v344
        %v375 = vpack.c.bf16 %v347, %v346
        %v376 = vpack.c.bf16 %v349, %v348
        %v377 = vpack.c.bf16 %v351, %v350
        %v378 = vpack.c.bf16 %v353, %v352
        %v379 = vpack.c.bf16 %v355, %v354
        %v380 = vpack.c.bf16 %v357, %v356
        %v381 = vpack.c.bf16 %v359, %v358
        %v382 = vpack.c.bf16 %v361, %v360
        %v383 = vpack.c.bf16 %v363, %v362
        %v384 = vpack.c.bf16 %v365, %v364
        %v385 = vpack.c.bf16 %v367, %v366
        %v386 = vpack.c.bf16 %v369, %v368
        %v387 = vpack.c.bf16 %v371, %v370
        %s388 = scalar_lea.vmem %s1, 4
        %v389 = vld [vmem:[%s388] sm:$0xf]
        %v391 = vsel %vm170, %v389, 0
        %v394 = vsel %vm170, %v372, 0
        %v397 = vsel %vm170, %v373, 0
        %v400 = vsel %vm170, %v374, 0
        %v403 = vsel %vm170, %v375, 0
        %v406 = vsel %vm170, %v376, 0
        %v409 = vsel %vm170, %v377, 0
        %v412 = vsel %vm170, %v378, 0
        %v415 = vsel %vm170, %v379, 0
        %v418 = vsel %vm170, %v380, 0
        %v421 = vsel %vm170, %v381, 0
        %v424 = vsel %vm170, %v382, 0
        %v427 = vsel %vm170, %v383, 0
        %v430 = vsel %vm170, %v384, 0
        %v433 = vsel %vm170, %v385, 0
        %v436 = vsel %vm170, %v386, 0
        %v439 = vsel %vm170, %v387, 0
        %441 = vmatprep.subr.bf16.mxu0 0
        %442 = vmatpush1.bf16.xpose.msra.mxu0 %v394
        %443 = vmatprep.subr.bf16.mxu0 0
        %444 = vmatpush1.bf16.xpose.msra.mxu0 %v397
        %445 = vmatprep.subr.bf16.mxu0 0
        %446 = vmatpush1.bf16.xpose.msra.mxu0 %v400
        %447 = vmatprep.subr.bf16.mxu0 0
        %448 = vmatpush1.bf16.xpose.msra.mxu0 %v403
        %449 = vmatprep.subr.bf16.mxu0 0
        %450 = vmatpush1.bf16.xpose.msra.mxu0 %v406
        %451 = vmatprep.subr.bf16.mxu0 0
        %452 = vmatpush1.bf16.xpose.msra.mxu0 %v409
        %453 = vmatprep.subr.bf16.mxu0 0
        %454 = vmatpush1.bf16.xpose.msra.mxu0 %v412
        %455 = vmatprep.subr.bf16.mxu0 0
        %456 = vmatpush1.bf16.xpose.msra.mxu0 %v415
        %457 = vmatprep.subr.bf16.mxu0 0
        %458 = vmatpush1.bf16.xpose.msra.mxu0 %v418
        %459 = vmatprep.subr.bf16.mxu0 0
        %460 = vmatpush1.bf16.xpose.msra.mxu0 %v421
        %461 = vmatprep.subr.bf16.mxu0 0
        %462 = vmatpush1.bf16.xpose.msra.mxu0 %v424
        %463 = vmatprep.subr.bf16.mxu0 0
        %464 = vmatpush1.bf16.xpose.msra.mxu0 %v427
        %465 = vmatprep.subr.bf16.mxu0 0
        %466 = vmatpush1.bf16.xpose.msra.mxu0 %v430
        %467 = vmatprep.subr.bf16.mxu0 0
        %468 = vmatpush1.bf16.xpose.msra.mxu0 %v433
        %469 = vmatprep.subr.bf16.mxu0 0
        %470 = vmatpush1.bf16.xpose.msra.mxu0 %v436
        %471 = vmatprep.subr.bf16.mxu0 0
        %472 = vmatpush1.bf16.xpose.msra.mxu0 %v439
        %473 = vmatprep.mubr.bf16.mxu0 0
        %474 = vmatmul.mubr.bf16.gmra.mrb[0].mxu0 %v391
        %v475 = vpop.f32.mrb[0].mxu0
        %v476 = vadd.f32 0.0, %v475
        %v477 = vpop.f32.mrb[0].mxu0
        %v478 = vadd.f32 0.0, %v477
        %v479 = vpop.f32.mrb[0].mxu0
        %v480 = vpop.f32.mrb[0].mxu0
        %481 = vdwg.mxu0
        %v483 = vsel %vm170, %v339, 0
        %v486 = vsel %vm170, %v323, 0
        %v489 = vsel %vm170, %v324, 0
        %v492 = vsel %vm170, %v325, 0
        %v495 = vsel %vm170, %v326, 0
        %v498 = vsel %vm170, %v327, 0
        %v501 = vsel %vm170, %v328, 0
        %v504 = vsel %vm170, %v329, 0
        %v507 = vsel %vm170, %v330, 0
        %v510 = vsel %vm170, %v331, 0
        %v513 = vsel %vm170, %v332, 0
        %v516 = vsel %vm170, %v333, 0
        %v519 = vsel %vm170, %v334, 0
        %v522 = vsel %vm170, %v335, 0
        %v525 = vsel %vm170, %v336, 0
        %v528 = vsel %vm170, %v337, 0
        %v531 = vsel %vm170, %v338, 0
        %533 = vmatprep.subr.bf16.mxu0 0
        %534 = vmatpush1.bf16.xpose.msra.mxu0 %v486
        %535 = vmatprep.subr.bf16.mxu0 0
        %536 = vmatpush1.bf16.xpose.msra.mxu0 %v489
        %537 = vmatprep.subr.bf16.mxu0 0
        %538 = vmatpush1.bf16.xpose.msra.mxu0 %v492
        %539 = vmatprep.subr.bf16.mxu0 0
        %540 = vmatpush1.bf16.xpose.msra.mxu0 %v495
        %541 = vmatprep.subr.bf16.mxu0 0
        %542 = vmatpush1.bf16.xpose.msra.mxu0 %v498
        %543 = vmatprep.subr.bf16.mxu0 0
        %544 = vmatpush1.bf16.xpose.msra.mxu0 %v501
        %545 = vmatprep.subr.bf16.mxu0 0
        %546 = vmatpush1.bf16.xpose.msra.mxu0 %v504
        %547 = vmatprep.subr.bf16.mxu0 0
        %548 = vmatpush1.bf16.xpose.msra.mxu0 %v507
        %549 = vmatprep.subr.bf16.mxu0 0
        %550 = vmatpush1.bf16.xpose.msra.mxu0 %v510
        %551 = vmatprep.subr.bf16.mxu0 0
        %552 = vmatpush1.bf16.xpose.msra.mxu0 %v513
        %553 = vmatprep.subr.bf16.mxu0 0
        %554 = vmatpush1.bf16.xpose.msra.mxu0 %v516
        %555 = vmatprep.subr.bf16.mxu0 0
        %556 = vmatpush1.bf16.xpose.msra.mxu0 %v519
        %557 = vmatprep.subr.bf16.mxu0 0
        %558 = vmatpush1.bf16.xpose.msra.mxu0 %v522
        %559 = vmatprep.subr.bf16.mxu0 0
        %560 = vmatpush1.bf16.xpose.msra.mxu0 %v525
        %561 = vmatprep.subr.bf16.mxu0 0
        %562 = vmatpush1.bf16.xpose.msra.mxu0 %v528
        %563 = vmatprep.subr.bf16.mxu0 0
        %564 = vmatpush1.bf16.xpose.msra.mxu0 %v531
        %565 = vmatprep.mubr.bf16.mxu0 0
        %566 = vmatmul.mubr.bf16.gmra.mrb[0].mxu0 %v483
        %v567 = vpop.f32.mrb[0].mxu0
        %v568 = vadd.f32 %v476, %v567
        %v569 = vpop.f32.mrb[0].mxu0
        %v570 = vadd.f32 %v478, %v569
        %v571 = vpop.f32.mrb[0].mxu0
        %v572 = vpop.f32.mrb[0].mxu0
        %573 = vdwg.mxu0
        %v574 = vld [vmem:[#allocation2 + $0x2] sm:$0xff]
        %v575 = vld [vmem:[#allocation2 + $0xa] sm:$0xff]
        %v576 = vld [vmem:[#allocation2 + $0x1a] sm:$0xff]
        %v577 = vld [vmem:[#allocation2 + $0x22] sm:$0xff]
        %v578 = vld [vmem:[#allocation2 + $0x32] sm:$0xff]
        %v579 = vld [vmem:[#allocation2 + $0x3a] sm:$0xff]
        %v580 = vld [vmem:[#allocation2 + $0x4a] sm:$0xff]
        %v581 = vld [vmem:[#allocation2 + $0x52] sm:$0xff]
        %v582 = vld [vmem:[#allocation2 + $0x62] sm:$0xff]
        %v583 = vld [vmem:[#allocation2 + $0x6a] sm:$0xff]
        %v584 = vld [vmem:[#allocation2 + $0x7a] sm:$0xff]
        %v585 = vld [vmem:[#allocation2 + $0x82] sm:$0xff]
        %v586 = vld [vmem:[#allocation2 + $0x92] sm:$0xff]
        %v587 = vld [vmem:[#allocation2 + $0x9a] sm:$0xff]
        %v588 = vld [vmem:[#allocation2 + $0xaa] sm:$0xff]
        %v589 = vld [vmem:[#allocation2 + $0xb2] sm:$0xff]
        %v590 = vld [vmem:[#allocation2 + $0xc2] sm:$0xff]
        %v591 = vld [vmem:[#allocation2 + $0xca] sm:$0xff]
        %v592 = vld [vmem:[#allocation2 + $0xda] sm:$0xff]
        %v593 = vld [vmem:[#allocation2 + $0xe2] sm:$0xff]
        %v594 = vld [vmem:[#allocation2 + $0xf2] sm:$0xff]
        %v595 = vld [vmem:[#allocation2 + $0xfa] sm:$0xff]
        %v596 = vld [vmem:[#allocation2 + $0x10a] sm:$0xff]
        %v597 = vld [vmem:[#allocation2 + $0x112] sm:$0xff]
        %v598 = vld [vmem:[#allocation2 + $0x122] sm:$0xff]
        %v599 = vld [vmem:[#allocation2 + $0x12a] sm:$0xff]
        %v600 = vld [vmem:[#allocation2 + $0x13a] sm:$0xff]
        %v601 = vld [vmem:[#allocation2 + $0x142] sm:$0xff]
        %v602 = vld [vmem:[#allocation2 + $0x152] sm:$0xff]
        %v603 = vld [vmem:[#allocation2 + $0x15a] sm:$0xff]
        %v604 = vld [vmem:[#allocation2 + $0x16a] sm:$0xff]
        %v605 = vld [vmem:[#allocation2 + $0x172] sm:$0xff]
        %v606 = vpack.c.bf16 %v575, %v574
        %v607 = vpack.c.bf16 %v577, %v576
        %v608 = vpack.c.bf16 %v579, %v578
        %v609 = vpack.c.bf16 %v581, %v580
        %v610 = vpack.c.bf16 %v583, %v582
        %v611 = vpack.c.bf16 %v585, %v584
        %v612 = vpack.c.bf16 %v587, %v586
        %v613 = vpack.c.bf16 %v589, %v588
        %v614 = vpack.c.bf16 %v591, %v590
        %v615 = vpack.c.bf16 %v593, %v592
        %v616 = vpack.c.bf16 %v595, %v594
        %v617 = vpack.c.bf16 %v597, %v596
        %v618 = vpack.c.bf16 %v599, %v598
        %v619 = vpack.c.bf16 %v601, %v600
        %v620 = vpack.c.bf16 %v603, %v602
        %v621 = vpack.c.bf16 %v605, %v604
        %s622 = scalar_lea.vmem %s1, 8
        %v623 = vld [vmem:[%s622] sm:$0xf]
        %v625 = vsel %vm170, %v623, 0
        %v628 = vsel %vm170, %v606, 0
        %v631 = vsel %vm170, %v607, 0
        %v634 = vsel %vm170, %v608, 0
        %v637 = vsel %vm170, %v609, 0
        %v640 = vsel %vm170, %v610, 0
        %v643 = vsel %vm170, %v611, 0
        %v646 = vsel %vm170, %v612, 0
        %v649 = vsel %vm170, %v613, 0
        %v652 = vsel %vm170, %v614, 0
        %v655 = vsel %vm170, %v615, 0
        %v658 = vsel %vm170, %v616, 0
        %v661 = vsel %vm170, %v617, 0
        %v664 = vsel %vm170, %v618, 0
        %v667 = vsel %vm170, %v619, 0
        %v670 = vsel %vm170, %v620, 0
        %v673 = vsel %vm170, %v621, 0
        %675 = vmatprep.subr.bf16.mxu0 0
        %676 = vmatpush1.bf16.xpose.msra.mxu0 %v628
        %677 = vmatprep.subr.bf16.mxu0 0
        %678 = vmatpush1.bf16.xpose.msra.mxu0 %v631
        %679 = vmatprep.subr.bf16.mxu0 0
        %680 = vmatpush1.bf16.xpose.msra.mxu0 %v634
        %681 = vmatprep.subr.bf16.mxu0 0
        %682 = vmatpush1.bf16.xpose.msra.mxu0 %v637
        %683 = vmatprep.subr.bf16.mxu0 0
        %684 = vmatpush1.bf16.xpose.msra.mxu0 %v640
        %685 = vmatprep.subr.bf16.mxu0 0
        %686 = vmatpush1.bf16.xpose.msra.mxu0 %v643
        %687 = vmatprep.subr.bf16.mxu0 0
        %688 = vmatpush1.bf16.xpose.msra.mxu0 %v646
        %689 = vmatprep.subr.bf16.mxu0 0
        %690 = vmatpush1.bf16.xpose.msra.mxu0 %v649
        %691 = vmatprep.subr.bf16.mxu0 0
        %692 = vmatpush1.bf16.xpose.msra.mxu0 %v652
        %693 = vmatprep.subr.bf16.mxu0 0
        %694 = vmatpush1.bf16.xpose.msra.mxu0 %v655
        %695 = vmatprep.subr.bf16.mxu0 0
        %696 = vmatpush1.bf16.xpose.msra.mxu0 %v658
        %697 = vmatprep.subr.bf16.mxu0 0
        %698 = vmatpush1.bf16.xpose.msra.mxu0 %v661
        %699 = vmatprep.subr.bf16.mxu0 0
        %700 = vmatpush1.bf16.xpose.msra.mxu0 %v664
        %701 = vmatprep.subr.bf16.mxu0 0
        %702 = vmatpush1.bf16.xpose.msra.mxu0 %v667
        %703 = vmatprep.subr.bf16.mxu0 0
        %704 = vmatpush1.bf16.xpose.msra.mxu0 %v670
        %705 = vmatprep.subr.bf16.mxu0 0
        %706 = vmatpush1.bf16.xpose.msra.mxu0 %v673
        %707 = vmatprep.mubr.bf16.mxu0 0
        %708 = vmatmul.mubr.bf16.gmra.mrb[0].mxu0 %v625
        %v709 = vpop.f32.mrb[0].mxu0
        %v710 = vadd.f32 0.0, %v709
        %v711 = vpop.f32.mrb[0].mxu0
        %v712 = vadd.f32 0.0, %v711
        %v713 = vpop.f32.mrb[0].mxu0
        %v714 = vpop.f32.mrb[0].mxu0
        %715 = vdwg.mxu0
        %v716 = vadd.f32 %v568, %v710
        %v717 = vadd.f32 %v570, %v712
        %v718 = vld [vmem:[%s258] sm:$0xff]
        %v719 = vld [vmem:[%s258 + $0x8] sm:$0xff]
        %v720 = vld [vmem:[%s258 + $0x18] sm:$0xff]
        %v721 = vld [vmem:[%s258 + $0x20] sm:$0xff]
        %v722 = vld [vmem:[%s258 + $0x30] sm:$0xff]
        %v723 = vld [vmem:[%s258 + $0x38] sm:$0xff]
        %v724 = vld [vmem:[%s258 + $0x48] sm:$0xff]
        %v725 = vld [vmem:[%s258 + $0x50] sm:$0xff]
        %v726 = vld [vmem:[%s258 + $0x60] sm:$0xff]
        %v727 = vld [vmem:[%s258 + $0x68] sm:$0xff]
        %v728 = vld [vmem:[%s258 + $0x78] sm:$0xff]
        %v729 = vld [vmem:[%s258 + $0x80] sm:$0xff]
        %v730 = vld [vmem:[%s258 + $0x90] sm:$0xff]
        %v731 = vld [vmem:[%s258 + $0x98] sm:$0xff]
        %v732 = vld [vmem:[%s258 + $0xa8] sm:$0xff]
        %v733 = vld [vmem:[%s258 + $0xb0] sm:$0xff]
        %v734 = vld [vmem:[%s258 + $0xc0] sm:$0xff]
        %v735 = vld [vmem:[%s258 + $0xc8] sm:$0xff]
        %v736 = vld [vmem:[%s258 + $0xd8] sm:$0xff]
        %v737 = vld [vmem:[%s258 + $0xe0] sm:$0xff]
        %v738 = vld [vmem:[%s258 + $0xf0] sm:$0xff]
        %v739 = vld [vmem:[%s258 + $0xf8] sm:$0xff]
        %v740 = vld [vmem:[%s258 + $0x108] sm:$0xff]
        %v741 = vld [vmem:[%s258 + $0x110] sm:$0xff]
        %v742 = vld [vmem:[%s258 + $0x120] sm:$0xff]
        %v743 = vld [vmem:[%s258 + $0x128] sm:$0xff]
        %v744 = vld [vmem:[%s258 + $0x138] sm:$0xff]
        %v745 = vld [vmem:[%s258 + $0x140] sm:$0xff]
        %v746 = vld [vmem:[%s258 + $0x150] sm:$0xff]
        %v747 = vld [vmem:[%s258 + $0x158] sm:$0xff]
        %v748 = vld [vmem:[%s258 + $0x168] sm:$0xff]
        %v749 = vld [vmem:[%s258 + $0x170] sm:$0xff]
        %v750 = vpack.c.bf16 %v719, %v718
        %v751 = vpack.c.bf16 %v721, %v720
        %v752 = vpack.c.bf16 %v723, %v722
        %v753 = vpack.c.bf16 %v725, %v724
        %v754 = vpack.c.bf16 %v727, %v726
        %v755 = vpack.c.bf16 %v729, %v728
        %v756 = vpack.c.bf16 %v731, %v730
        %v757 = vpack.c.bf16 %v733, %v732
        %v758 = vpack.c.bf16 %v735, %v734
        %v759 = vpack.c.bf16 %v737, %v736
        %v760 = vpack.c.bf16 %v739, %v738
        %v761 = vpack.c.bf16 %v741, %v740
        %v762 = vpack.c.bf16 %v743, %v742
        %v763 = vpack.c.bf16 %v745, %v744
        %v764 = vpack.c.bf16 %v747, %v746
        %v765 = vpack.c.bf16 %v749, %v748
        %s766 = scalar_lea.vmem %s1, 12
        %v767 = vld [vmem:[%s766] sm:$0xf]
        %v769 = vsel %vm170, %v767, 0
        %v772 = vsel %vm170, %v750, 0
        %v775 = vsel %vm170, %v751, 0
        %v778 = vsel %vm170, %v752, 0
        %v781 = vsel %vm170, %v753, 0
        %v784 = vsel %vm170, %v754, 0
        %v787 = vsel %vm170, %v755, 0
        %v790 = vsel %vm170, %v756, 0
        %v793 = vsel %vm170, %v757, 0
        %v796 = vsel %vm170, %v758, 0
        %v799 = vsel %vm170, %v759, 0
        %v802 = vsel %vm170, %v760, 0
        %v805 = vsel %vm170, %v761, 0
        %v808 = vsel %vm170, %v762, 0
        %v811 = vsel %vm170, %v763, 0
        %v814 = vsel %vm170, %v764, 0
        %v817 = vsel %vm170, %v765, 0
        %819 = vmatprep.subr.bf16.mxu0 0
        %820 = vmatpush1.bf16.xpose.msra.mxu0 %v772
        %821 = vmatprep.subr.bf16.mxu0 0
        %822 = vmatpush1.bf16.xpose.msra.mxu0 %v775
        %823 = vmatprep.subr.bf16.mxu0 0
        %824 = vmatpush1.bf16.xpose.msra.mxu0 %v778
        %825 = vmatprep.subr.bf16.mxu0 0
        %826 = vmatpush1.bf16.xpose.msra.mxu0 %v781
        %827 = vmatprep.subr.bf16.mxu0 0
        %828 = vmatpush1.bf16.xpose.msra.mxu0 %v784
        %829 = vmatprep.subr.bf16.mxu0 0
        %830 = vmatpush1.bf16.xpose.msra.mxu0 %v787
        %831 = vmatprep.subr.bf16.mxu0 0
        %832 = vmatpush1.bf16.xpose.msra.mxu0 %v790
        %833 = vmatprep.subr.bf16.mxu0 0
        %834 = vmatpush1.bf16.xpose.msra.mxu0 %v793
        %835 = vmatprep.subr.bf16.mxu0 0
        %836 = vmatpush1.bf16.xpose.msra.mxu0 %v796
        %837 = vmatprep.subr.bf16.mxu0 0
        %838 = vmatpush1.bf16.xpose.msra.mxu0 %v799
        %839 = vmatprep.subr.bf16.mxu0 0
        %840 = vmatpush1.bf16.xpose.msra.mxu0 %v802
        %841 = vmatprep.subr.bf16.mxu0 0
        %842 = vmatpush1.bf16.xpose.msra.mxu0 %v805
        %843 = vmatprep.subr.bf16.mxu0 0
        %844 = vmatpush1.bf16.xpose.msra.mxu0 %v808
        %845 = vmatprep.subr.bf16.mxu0 0
        %846 = vmatpush1.bf16.xpose.msra.mxu0 %v811
        %847 = vmatprep.subr.bf16.mxu0 0
        %848 = vmatpush1.bf16.xpose.msra.mxu0 %v814
        %849 = vmatprep.subr.bf16.mxu0 0
        %850 = vmatpush1.bf16.xpose.msra.mxu0 %v817
        %851 = vmatprep.mubr.bf16.mxu0 0
        %852 = vmatmul.mubr.bf16.gmra.mrb[0].mxu0 %v769
        %v853 = vpop.f32.mrb[0].mxu0
        %v854 = vadd.f32 0.0, %v853
        %v855 = vpop.f32.mrb[0].mxu0
        %v856 = vadd.f32 0.0, %v855
        %v857 = vpop.f32.mrb[0].mxu0
        %v858 = vpop.f32.mrb[0].mxu0
        %859 = vdwg.mxu0
        %v860 = vadd.f32 %v716, %v854
        %v861 = vadd.f32 %v717, %v856
        %v862 = vld [vmem:[%s258 + $0x1] sm:$0xff]
        %v863 = vld [vmem:[%s258 + $0x9] sm:$0xff]
        %v864 = vld [vmem:[%s258 + $0x19] sm:$0xff]
        %v865 = vld [vmem:[%s258 + $0x21] sm:$0xff]
        %v866 = vld [vmem:[%s258 + $0x31] sm:$0xff]
        %v867 = vld [vmem:[%s258 + $0x39] sm:$0xff]
        %v868 = vld [vmem:[%s258 + $0x49] sm:$0xff]
        %v869 = vld [vmem:[%s258 + $0x51] sm:$0xff]
        %v870 = vld [vmem:[%s258 + $0x61] sm:$0xff]
        %v871 = vld [vmem:[%s258 + $0x69] sm:$0xff]
        %v872 = vld [vmem:[%s258 + $0x79] sm:$0xff]
        %v873 = vld [vmem:[%s258 + $0x81] sm:$0xff]
        %v874 = vld [vmem:[%s258 + $0x91] sm:$0xff]
        %v875 = vld [vmem:[%s258 + $0x99] sm:$0xff]
        %v876 = vld [vmem:[%s258 + $0xa9] sm:$0xff]
        %v877 = vld [vmem:[%s258 + $0xb1] sm:$0xff]
        %v878 = vld [vmem:[%s258 + $0xc1] sm:$0xff]
        %v879 = vld [vmem:[%s258 + $0xc9] sm:$0xff]
        %v880 = vld [vmem:[%s258 + $0xd9] sm:$0xff]
        %v881 = vld [vmem:[%s258 + $0xe1] sm:$0xff]
        %v882 = vld [vmem:[%s258 + $0xf1] sm:$0xff]
        %v883 = vld [vmem:[%s258 + $0xf9] sm:$0xff]
        %v884 = vld [vmem:[%s258 + $0x109] sm:$0xff]
        %v885 = vld [vmem:[%s258 + $0x111] sm:$0xff]
        %v886 = vld [vmem:[%s258 + $0x121] sm:$0xff]
        %v887 = vld [vmem:[%s258 + $0x129] sm:$0xff]
        %v888 = vld [vmem:[%s258 + $0x139] sm:$0xff]
        %v889 = vld [vmem:[%s258 + $0x141] sm:$0xff]
        %v890 = vld [vmem:[%s258 + $0x151] sm:$0xff]
        %v891 = vld [vmem:[%s258 + $0x159] sm:$0xff]
        %v892 = vld [vmem:[%s258 + $0x169] sm:$0xff]
        %v893 = vld [vmem:[%s258 + $0x171] sm:$0xff]
        %v894 = vpack.c.bf16 %v863, %v862
        %v895 = vpack.c.bf16 %v865, %v864
        %v896 = vpack.c.bf16 %v867, %v866
        %v897 = vpack.c.bf16 %v869, %v868
        %v898 = vpack.c.bf16 %v871, %v870
        %v899 = vpack.c.bf16 %v873, %v872
        %v900 = vpack.c.bf16 %v875, %v874
        %v901 = vpack.c.bf16 %v877, %v876
        %v902 = vpack.c.bf16 %v879, %v878
        %v903 = vpack.c.bf16 %v881, %v880
        %v904 = vpack.c.bf16 %v883, %v882
        %v905 = vpack.c.bf16 %v885, %v884
        %v906 = vpack.c.bf16 %v887, %v886
        %v907 = vpack.c.bf16 %v889, %v888
        %v908 = vpack.c.bf16 %v891, %v890
        %v909 = vpack.c.bf16 %v893, %v892
        %s910 = scalar_lea.vmem %s1, 16
        %v911 = vld [vmem:[%s910] sm:$0xf]
        %v913 = vsel %vm170, %v911, 0
        %v916 = vsel %vm170, %v894, 0
        %v919 = vsel %vm170, %v895, 0
        %v922 = vsel %vm170, %v896, 0
        %v925 = vsel %vm170, %v897, 0
        %v928 = vsel %vm170, %v898, 0
        %v931 = vsel %vm170, %v899, 0
        %v934 = vsel %vm170, %v900, 0
        %v937 = vsel %vm170, %v901, 0
        %v940 = vsel %vm170, %v902, 0
        %v943 = vsel %vm170, %v903, 0
        %v946 = vsel %vm170, %v904, 0
        %v949 = vsel %vm170, %v905, 0
        %v952 = vsel %vm170, %v906, 0
        %v955 = vsel %vm170, %v907, 0
        %v958 = vsel %vm170, %v908, 0
        %v961 = vsel %vm170, %v909, 0
        %963 = vmatprep.subr.bf16.mxu0 0
        %964 = vmatpush1.bf16.xpose.msra.mxu0 %v916
        %965 = vmatprep.subr.bf16.mxu0 0
        %966 = vmatpush1.bf16.xpose.msra.mxu0 %v919
        %967 = vmatprep.subr.bf16.mxu0 0
        %968 = vmatpush1.bf16.xpose.msra.mxu0 %v922
        %969 = vmatprep.subr.bf16.mxu0 0
        %970 = vmatpush1.bf16.xpose.msra.mxu0 %v925
        %971 = vmatprep.subr.bf16.mxu0 0
        %972 = vmatpush1.bf16.xpose.msra.mxu0 %v928
        %973 = vmatprep.subr.bf16.mxu0 0
        %974 = vmatpush1.bf16.xpose.msra.mxu0 %v931
        %975 = vmatprep.subr.bf16.mxu0 0
        %976 = vmatpush1.bf16.xpose.msra.mxu0 %v934
        %977 = vmatprep.subr.bf16.mxu0 0
        %978 = vmatpush1.bf16.xpose.msra.mxu0 %v937
        %979 = vmatprep.subr.bf16.mxu0 0
        %980 = vmatpush1.bf16.xpose.msra.mxu0 %v940
        %981 = vmatprep.subr.bf16.mxu0 0
        %982 = vmatpush1.bf16.xpose.msra.mxu0 %v943
        %983 = vmatprep.subr.bf16.mxu0 0
        %984 = vmatpush1.bf16.xpose.msra.mxu0 %v946
        %985 = vmatprep.subr.bf16.mxu0 0
        %986 = vmatpush1.bf16.xpose.msra.mxu0 %v949
        %987 = vmatprep.subr.bf16.mxu0 0
        %988 = vmatpush1.bf16.xpose.msra.mxu0 %v952
        %989 = vmatprep.subr.bf16.mxu0 0
        %990 = vmatpush1.bf16.xpose.msra.mxu0 %v955
        %991 = vmatprep.subr.bf16.mxu0 0
        %992 = vmatpush1.bf16.xpose.msra.mxu0 %v958
        %993 = vmatprep.subr.bf16.mxu0 0
        %994 = vmatpush1.bf16.xpose.msra.mxu0 %v961
        %995 = vmatprep.mubr.bf16.mxu0 0
        %996 = vmatmul.mubr.bf16.gmra.mrb[0].mxu0 %v913
        %v997 = vpop.f32.mrb[0].mxu0
        %v998 = vadd.f32 0.0, %v997
        %v999 = vpop.f32.mrb[0].mxu0
        %v1000 = vadd.f32 0.0, %v999
        %v1001 = vpop.f32.mrb[0].mxu0
        %v1002 = vpop.f32.mrb[0].mxu0
        %1003 = vdwg.mxu0
        %v1004 = vadd.f32 %v860, %v998
        %v1005 = vadd.f32 %v861, %v1000
        %v1006 = vld [vmem:[%s258 + $0x2] sm:$0xff]
        %v1007 = vld [vmem:[%s258 + $0xa] sm:$0xff]
        %v1008 = vld [vmem:[%s258 + $0x1a] sm:$0xff]
        %v1009 = vld [vmem:[%s258 + $0x22] sm:$0xff]
        %v1010 = vld [vmem:[%s258 + $0x32] sm:$0xff]
        %v1011 = vld [vmem:[%s258 + $0x3a] sm:$0xff]
        %v1012 = vld [vmem:[%s258 + $0x4a] sm:$0xff]
        %v1013 = vld [vmem:[%s258 + $0x52] sm:$0xff]
        %v1014 = vld [vmem:[%s258 + $0x62] sm:$0xff]
        %v1015 = vld [vmem:[%s258 + $0x6a] sm:$0xff]
        %v1016 = vld [vmem:[%s258 + $0x7a] sm:$0xff]
        %v1017 = vld [vmem:[%s258 + $0x82] sm:$0xff]
        %v1018 = vld [vmem:[%s258 + $0x92] sm:$0xff]
        %v1019 = vld [vmem:[%s258 + $0x9a] sm:$0xff]
        %v1020 = vld [vmem:[%s258 + $0xaa] sm:$0xff]
        %v1021 = vld [vmem:[%s258 + $0xb2] sm:$0xff]
        %v1022 = vld [vmem:[%s258 + $0xc2] sm:$0xff]
        %v1023 = vld [vmem:[%s258 + $0xca] sm:$0xff]
        %v1024 = vld [vmem:[%s258 + $0xda] sm:$0xff]
        %v1025 = vld [vmem:[%s258 + $0xe2] sm:$0xff]
        %v1026 = vld [vmem:[%s258 + $0xf2] sm:$0xff]
        %v1027 = vld [vmem:[%s258 + $0xfa] sm:$0xff]
        %v1028 = vld [vmem:[%s258 + $0x10a] sm:$0xff]
        %v1029 = vld [vmem:[%s258 + $0x112] sm:$0xff]
        %v1030 = vld [vmem:[%s258 + $0x122] sm:$0xff]
        %v1031 = vld [vmem:[%s258 + $0x12a] sm:$0xff]
        %v1032 = vld [vmem:[%s258 + $0x13a] sm:$0xff]
        %v1033 = vld [vmem:[%s258 + $0x142] sm:$0xff]
        %v1034 = vld [vmem:[%s258 + $0x152] sm:$0xff]
        %v1035 = vld [vmem:[%s258 + $0x15a] sm:$0xff]
        %v1036 = vld [vmem:[%s258 + $0x16a] sm:$0xff]
        %v1037 = vld [vmem:[%s258 + $0x172] sm:$0xff]
        %v1038 = vpack.c.bf16 %v1007, %v1006
        %v1039 = vpack.c.bf16 %v1009, %v1008
        %v1040 = vpack.c.bf16 %v1011, %v1010
        %v1041 = vpack.c.bf16 %v1013, %v1012
        %v1042 = vpack.c.bf16 %v1015, %v1014
        %v1043 = vpack.c.bf16 %v1017, %v1016
        %v1044 = vpack.c.bf16 %v1019, %v1018
        %v1045 = vpack.c.bf16 %v1021, %v1020
        %v1046 = vpack.c.bf16 %v1023, %v1022
        %v1047 = vpack.c.bf16 %v1025, %v1024
        %v1048 = vpack.c.bf16 %v1027, %v1026
        %v1049 = vpack.c.bf16 %v1029, %v1028
        %v1050 = vpack.c.bf16 %v1031, %v1030
        %v1051 = vpack.c.bf16 %v1033, %v1032
        %v1052 = vpack.c.bf16 %v1035, %v1034
        %v1053 = vpack.c.bf16 %v1037, %v1036
        %s1054 = scalar_lea.vmem %s1, 20
        %v1055 = vld [vmem:[%s1054] sm:$0xf]
        %v1057 = vsel %vm170, %v1055, 0
        %v1060 = vsel %vm170, %v1038, 0
        %v1063 = vsel %vm170, %v1039, 0
        %v1066 = vsel %vm170, %v1040, 0
        %v1069 = vsel %vm170, %v1041, 0
        %v1072 = vsel %vm170, %v1042, 0
        %v1075 = vsel %vm170, %v1043, 0
        %v1078 = vsel %vm170, %v1044, 0
        %v1081 = vsel %vm170, %v1045, 0
        %v1084 = vsel %vm170, %v1046, 0
        %v1087 = vsel %vm170, %v1047, 0
        %v1090 = vsel %vm170, %v1048, 0
        %v1093 = vsel %vm170, %v1049, 0
        %v1096 = vsel %vm170, %v1050, 0
        %v1099 = vsel %vm170, %v1051, 0
        %v1102 = vsel %vm170, %v1052, 0
        %v1105 = vsel %vm170, %v1053, 0
        %1107 = vmatprep.subr.bf16.mxu0 0
        %1108 = vmatpush1.bf16.xpose.msra.mxu0 %v1060
        %1109 = vmatprep.subr.bf16.mxu0 0
        %1110 = vmatpush1.bf16.xpose.msra.mxu0 %v1063
        %1111 = vmatprep.subr.bf16.mxu0 0
        %1112 = vmatpush1.bf16.xpose.msra.mxu0 %v1066
        %1113 = vmatprep.subr.bf16.mxu0 0
        %1114 = vmatpush1.bf16.xpose.msra.mxu0 %v1069
        %1115 = vmatprep.subr.bf16.mxu0 0
        %1116 = vmatpush1.bf16.xpose.msra.mxu0 %v1072
        %1117 = vmatprep.subr.bf16.mxu0 0
        %1118 = vmatpush1.bf16.xpose.msra.mxu0 %v1075
        %1119 = vmatprep.subr.bf16.mxu0 0
        %1120 = vmatpush1.bf16.xpose.msra.mxu0 %v1078
        %1121 = vmatprep.subr.bf16.mxu0 0
        %1122 = vmatpush1.bf16.xpose.msra.mxu0 %v1081
        %1123 = vmatprep.subr.bf16.mxu0 0
        %1124 = vmatpush1.bf16.xpose.msra.mxu0 %v1084
        %1125 = vmatprep.subr.bf16.mxu0 0
        %1126 = vmatpush1.bf16.xpose.msra.mxu0 %v1087
        %1127 = vmatprep.subr.bf16.mxu0 0
        %1128 = vmatpush1.bf16.xpose.msra.mxu0 %v1090
        %1129 = vmatprep.subr.bf16.mxu0 0
        %1130 = vmatpush1.bf16.xpose.msra.mxu0 %v1093
        %1131 = vmatprep.subr.bf16.mxu0 0
        %1132 = vmatpush1.bf16.xpose.msra.mxu0 %v1096
        %1133 = vmatprep.subr.bf16.mxu0 0
        %1134 = vmatpush1.bf16.xpose.msra.mxu0 %v1099
        %1135 = vmatprep.subr.bf16.mxu0 0
        %1136 = vmatpush1.bf16.xpose.msra.mxu0 %v1102
        %1137 = vmatprep.subr.bf16.mxu0 0
        %1138 = vmatpush1.bf16.xpose.msra.mxu0 %v1105
        %1139 = vmatprep.mubr.bf16.mxu0 0
        %1140 = vmatmul.mubr.bf16.gmra.mrb[0].mxu0 %v1057
        %v1141 = vpop.f32.mrb[0].mxu0
        %v1142 = vadd.f32 0.0, %v1141
        %v1143 = vpop.f32.mrb[0].mxu0
        %v1144 = vadd.f32 0.0, %v1143
        %v1145 = vpop.f32.mrb[0].mxu0
        %v1146 = vpop.f32.mrb[0].mxu0
        %1147 = vdwg.mxu0
        %v1148 = vadd.f32 %v1004, %v1142
        %v1149 = vadd.f32 %v1005, %v1144
        %s1150 = scalar_lea.vmem [#allocation2], 48
        %v1151 = vld [vmem:[%s1150] sm:$0xff]
        %v1152 = vld [vmem:[%s1150 + $0x8] sm:$0xff]
        %v1153 = vld [vmem:[%s1150 + $0x18] sm:$0xff]
        %v1154 = vld [vmem:[%s1150 + $0x20] sm:$0xff]
        %v1155 = vld [vmem:[%s1150 + $0x30] sm:$0xff]
        %v1156 = vld [vmem:[%s1150 + $0x38] sm:$0xff]
        %v1157 = vld [vmem:[%s1150 + $0x48] sm:$0xff]
        %v1158 = vld [vmem:[%s1150 + $0x50] sm:$0xff]
        %v1159 = vld [vmem:[%s1150 + $0x60] sm:$0xff]
        %v1160 = vld [vmem:[%s1150 + $0x68] sm:$0xff]
        %v1161 = vld [vmem:[%s1150 + $0x78] sm:$0xff]
        %v1162 = vld [vmem:[%s1150 + $0x80] sm:$0xff]
        %v1163 = vld [vmem:[%s1150 + $0x90] sm:$0xff]
        %v1164 = vld [vmem:[%s1150 + $0x98] sm:$0xff]
        %v1165 = vld [vmem:[%s1150 + $0xa8] sm:$0xff]
        %v1166 = vld [vmem:[%s1150 + $0xb0] sm:$0xff]
        %v1167 = vld [vmem:[%s1150 + $0xc0] sm:$0xff]
        %v1168 = vld [vmem:[%s1150 + $0xc8] sm:$0xff]
        %v1169 = vld [vmem:[%s1150 + $0xd8] sm:$0xff]
        %v1170 = vld [vmem:[%s1150 + $0xe0] sm:$0xff]
        %v1171 = vld [vmem:[%s1150 + $0xf0] sm:$0xff]
        %v1172 = vld [vmem:[%s1150 + $0xf8] sm:$0xff]
        %v1173 = vld [vmem:[%s1150 + $0x108] sm:$0xff]
        %v1174 = vld [vmem:[%s1150 + $0x110] sm:$0xff]
        %v1175 = vld [vmem:[%s1150 + $0x120] sm:$0xff]
        %v1176 = vld [vmem:[%s1150 + $0x128] sm:$0xff]
        %v1177 = vld [vmem:[%s1150 + $0x138] sm:$0xff]
        %v1178 = vld [vmem:[%s1150 + $0x140] sm:$0xff]
        %v1179 = vld [vmem:[%s1150 + $0x150] sm:$0xff]
        %v1180 = vld [vmem:[%s1150 + $0x158] sm:$0xff]
        %v1181 = vld [vmem:[%s1150 + $0x168] sm:$0xff]
        %v1182 = vld [vmem:[%s1150 + $0x170] sm:$0xff]
        %v1183 = vpack.c.bf16 %v1152, %v1151
        %v1184 = vpack.c.bf16 %v1154, %v1153
        %v1185 = vpack.c.bf16 %v1156, %v1155
        %v1186 = vpack.c.bf16 %v1158, %v1157
        %v1187 = vpack.c.bf16 %v1160, %v1159
        %v1188 = vpack.c.bf16 %v1162, %v1161
        %v1189 = vpack.c.bf16 %v1164, %v1163
        %v1190 = vpack.c.bf16 %v1166, %v1165
        %v1191 = vpack.c.bf16 %v1168, %v1167
        %v1192 = vpack.c.bf16 %v1170, %v1169
        %v1193 = vpack.c.bf16 %v1172, %v1171
        %v1194 = vpack.c.bf16 %v1174, %v1173
        %v1195 = vpack.c.bf16 %v1176, %v1175
        %v1196 = vpack.c.bf16 %v1178, %v1177
        %v1197 = vpack.c.bf16 %v1180, %v1179
        %v1198 = vpack.c.bf16 %v1182, %v1181
        %s1199 = scalar_lea.vmem %s1, 24
        %v1200 = vld [vmem:[%s1199] sm:$0xf]
        %v1202 = vsel %vm170, %v1200, 0
        %v1205 = vsel %vm170, %v1183, 0
        %v1208 = vsel %vm170, %v1184, 0
        %v1211 = vsel %vm170, %v1185, 0
        %v1214 = vsel %vm170, %v1186, 0
        %v1217 = vsel %vm170, %v1187, 0
        %v1220 = vsel %vm170, %v1188, 0
        %v1223 = vsel %vm170, %v1189, 0
        %v1226 = vsel %vm170, %v1190, 0
        %v1229 = vsel %vm170, %v1191, 0
        %v1232 = vsel %vm170, %v1192, 0
        %v1235 = vsel %vm170, %v1193, 0
        %v1238 = vsel %vm170, %v1194, 0
        %v1241 = vsel %vm170, %v1195, 0
        %v1244 = vsel %vm170, %v1196, 0
        %v1247 = vsel %vm170, %v1197, 0
        %v1250 = vsel %vm170, %v1198, 0
        %1252 = vmatprep.subr.bf16.mxu0 0
        %1253 = vmatpush1.bf16.xpose.msra.mxu0 %v1205
        %1254 = vmatprep.subr.bf16.mxu0 0
        %1255 = vmatpush1.bf16.xpose.msra.mxu0 %v1208
        %1256 = vmatprep.subr.bf16.mxu0 0
        %1257 = vmatpush1.bf16.xpose.msra.mxu0 %v1211
        %1258 = vmatprep.subr.bf16.mxu0 0
        %1259 = vmatpush1.bf16.xpose.msra.mxu0 %v1214
        %1260 = vmatprep.subr.bf16.mxu0 0
        %1261 = vmatpush1.bf16.xpose.msra.mxu0 %v1217
        %1262 = vmatprep.subr.bf16.mxu0 0
        %1263 = vmatpush1.bf16.xpose.msra.mxu0 %v1220
        %1264 = vmatprep.subr.bf16.mxu0 0
        %1265 = vmatpush1.bf16.xpose.msra.mxu0 %v1223
        %1266 = vmatprep.subr.bf16.mxu0 0
        %1267 = vmatpush1.bf16.xpose.msra.mxu0 %v1226
        %1268 = vmatprep.subr.bf16.mxu0 0
        %1269 = vmatpush1.bf16.xpose.msra.mxu0 %v1229
        %1270 = vmatprep.subr.bf16.mxu0 0
        %1271 = vmatpush1.bf16.xpose.msra.mxu0 %v1232
        %1272 = vmatprep.subr.bf16.mxu0 0
        %1273 = vmatpush1.bf16.xpose.msra.mxu0 %v1235
        %1274 = vmatprep.subr.bf16.mxu0 0
        %1275 = vmatpush1.bf16.xpose.msra.mxu0 %v1238
        %1276 = vmatprep.subr.bf16.mxu0 0
        %1277 = vmatpush1.bf16.xpose.msra.mxu0 %v1241
        %1278 = vmatprep.subr.bf16.mxu0 0
        %1279 = vmatpush1.bf16.xpose.msra.mxu0 %v1244
        %1280 = vmatprep.subr.bf16.mxu0 0
        %1281 = vmatpush1.bf16.xpose.msra.mxu0 %v1247
        %1282 = vmatprep.subr.bf16.mxu0 0
        %1283 = vmatpush1.bf16.xpose.msra.mxu0 %v1250
        %1284 = vmatprep.mubr.bf16.mxu0 0
        %1285 = vmatmul.mubr.bf16.gmra.mrb[0].mxu0 %v1202
        %v1286 = vpop.f32.mrb[0].mxu0
        %v1287 = vadd.f32 0.0, %v1286
        %v1288 = vpop.f32.mrb[0].mxu0
        %v1289 = vadd.f32 0.0, %v1288
        %v1290 = vpop.f32.mrb[0].mxu0
        %v1291 = vpop.f32.mrb[0].mxu0
        %1292 = vdwg.mxu0
        %v1293 = vadd.f32 %v1148, %v1287
        %v1294 = vadd.f32 %v1149, %v1289
        %v1295 = vld [vmem:[%s1150 + $0x1] sm:$0xff]
        %v1296 = vld [vmem:[%s1150 + $0x9] sm:$0xff]
        %v1297 = vld [vmem:[%s1150 + $0x19] sm:$0xff]
        %v1298 = vld [vmem:[%s1150 + $0x21] sm:$0xff]
        %v1299 = vld [vmem:[%s1150 + $0x31] sm:$0xff]
        %v1300 = vld [vmem:[%s1150 + $0x39] sm:$0xff]
        %v1301 = vld [vmem:[%s1150 + $0x49] sm:$0xff]
        %v1302 = vld [vmem:[%s1150 + $0x51] sm:$0xff]
        %v1303 = vld [vmem:[%s1150 + $0x61] sm:$0xff]
        %v1304 = vld [vmem:[%s1150 + $0x69] sm:$0xff]
        %v1305 = vld [vmem:[%s1150 + $0x79] sm:$0xff]
        %v1306 = vld [vmem:[%s1150 + $0x81] sm:$0xff]
        %v1307 = vld [vmem:[%s1150 + $0x91] sm:$0xff]
        %v1308 = vld [vmem:[%s1150 + $0x99] sm:$0xff]
        %v1309 = vld [vmem:[%s1150 + $0xa9] sm:$0xff]
        %v1310 = vld [vmem:[%s1150 + $0xb1] sm:$0xff]
        %v1311 = vld [vmem:[%s1150 + $0xc1] sm:$0xff]
        %v1312 = vld [vmem:[%s1150 + $0xc9] sm:$0xff]
        %v1313 = vld [vmem:[%s1150 + $0xd9] sm:$0xff]
        %v1314 = vld [vmem:[%s1150 + $0xe1] sm:$0xff]
        %v1315 = vld [vmem:[%s1150 + $0xf1] sm:$0xff]
        %v1316 = vld [vmem:[%s1150 + $0xf9] sm:$0xff]
        %v1317 = vld [vmem:[%s1150 + $0x109] sm:$0xff]
        %v1318 = vld [vmem:[%s1150 + $0x111] sm:$0xff]
        %v1319 = vld [vmem:[%s1150 + $0x121] sm:$0xff]
        %v1320 = vld [vmem:[%s1150 + $0x129] sm:$0xff]
        %v1321 = vld [vmem:[%s1150 + $0x139] sm:$0xff]
        %v1322 = vld [vmem:[%s1150 + $0x141] sm:$0xff]
        %v1323 = vld [vmem:[%s1150 + $0x151] sm:$0xff]
        %v1324 = vld [vmem:[%s1150 + $0x159] sm:$0xff]
        %v1325 = vld [vmem:[%s1150 + $0x169] sm:$0xff]
        %v1326 = vld [vmem:[%s1150 + $0x171] sm:$0xff]
        %v1327 = vpack.c.bf16 %v1296, %v1295
        %v1328 = vpack.c.bf16 %v1298, %v1297
        %v1329 = vpack.c.bf16 %v1300, %v1299
        %v1330 = vpack.c.bf16 %v1302, %v1301
        %v1331 = vpack.c.bf16 %v1304, %v1303
        %v1332 = vpack.c.bf16 %v1306, %v1305
        %v1333 = vpack.c.bf16 %v1308, %v1307
        %v1334 = vpack.c.bf16 %v1310, %v1309
        %v1335 = vpack.c.bf16 %v1312, %v1311
        %v1336 = vpack.c.bf16 %v1314, %v1313
        %v1337 = vpack.c.bf16 %v1316, %v1315
        %v1338 = vpack.c.bf16 %v1318, %v1317
        %v1339 = vpack.c.bf16 %v1320, %v1319
        %v1340 = vpack.c.bf16 %v1322, %v1321
        %v1341 = vpack.c.bf16 %v1324, %v1323
        %v1342 = vpack.c.bf16 %v1326, %v1325
        %s1343 = scalar_lea.vmem %s1, 28
        %v1344 = vld [vmem:[%s1343] sm:$0xf]
        %v1346 = vsel %vm170, %v1344, 0
        %v1349 = vsel %vm170, %v1327, 0
        %v1352 = vsel %vm170, %v1328, 0
        %v1355 = vsel %vm170, %v1329, 0
        %v1358 = vsel %vm170, %v1330, 0
        %v1361 = vsel %vm170, %v1331, 0
        %v1364 = vsel %vm170, %v1332, 0
        %v1367 = vsel %vm170, %v1333, 0
        %v1370 = vsel %vm170, %v1334, 0
        %v1373 = vsel %vm170, %v1335, 0
        %v1376 = vsel %vm170, %v1336, 0
        %v1379 = vsel %vm170, %v1337, 0
        %v1382 = vsel %vm170, %v1338, 0
        %v1385 = vsel %vm170, %v1339, 0
        %v1388 = vsel %vm170, %v1340, 0
        %v1391 = vsel %vm170, %v1341, 0
        %v1394 = vsel %vm170, %v1342, 0
        %1396 = vmatprep.subr.bf16.mxu0 0
        %1397 = vmatpush1.bf16.xpose.msra.mxu0 %v1349
        %1398 = vmatprep.subr.bf16.mxu0 0
        %1399 = vmatpush1.bf16.xpose.msra.mxu0 %v1352
        %1400 = vmatprep.subr.bf16.mxu0 0
        %1401 = vmatpush1.bf16.xpose.msra.mxu0 %v1355
        %1402 = vmatprep.subr.bf16.mxu0 0
        %1403 = vmatpush1.bf16.xpose.msra.mxu0 %v1358
        %1404 = vmatprep.subr.bf16.mxu0 0
        %1405 = vmatpush1.bf16.xpose.msra.mxu0 %v1361
        %1406 = vmatprep.subr.bf16.mxu0 0
        %1407 = vmatpush1.bf16.xpose.msra.mxu0 %v1364
        %1408 = vmatprep.subr.bf16.mxu0 0
        %1409 = vmatpush1.bf16.xpose.msra.mxu0 %v1367
        %1410 = vmatprep.subr.bf16.mxu0 0
        %1411 = vmatpush1.bf16.xpose.msra.mxu0 %v1370
        %1412 = vmatprep.subr.bf16.mxu0 0
        %1413 = vmatpush1.bf16.xpose.msra.mxu0 %v1373
        %1414 = vmatprep.subr.bf16.mxu0 0
        %1415 = vmatpush1.bf16.xpose.msra.mxu0 %v1376
        %1416 = vmatprep.subr.bf16.mxu0 0
        %1417 = vmatpush1.bf16.xpose.msra.mxu0 %v1379
        %1418 = vmatprep.subr.bf16.mxu0 0
        %1419 = vmatpush1.bf16.xpose.msra.mxu0 %v1382
        %1420 = vmatprep.subr.bf16.mxu0 0
        %1421 = vmatpush1.bf16.xpose.msra.mxu0 %v1385
        %1422 = vmatprep.subr.bf16.mxu0 0
        %1423 = vmatpush1.bf16.xpose.msra.mxu0 %v1388
        %1424 = vmatprep.subr.bf16.mxu0 0
        %1425 = vmatpush1.bf16.xpose.msra.mxu0 %v1391
        %1426 = vmatprep.subr.bf16.mxu0 0
        %1427 = vmatpush1.bf16.xpose.msra.mxu0 %v1394
        %1428 = vmatprep.mubr.bf16.mxu0 0
        %1429 = vmatmul.mubr.bf16.gmra.mrb[0].mxu0 %v1346
        %v1430 = vpop.f32.mrb[0].mxu0
        %v1431 = vadd.f32 0.0, %v1430
        %v1432 = vpop.f32.mrb[0].mxu0
        %v1433 = vadd.f32 0.0, %v1432
        %v1434 = vpop.f32.mrb[0].mxu0
        %v1435 = vpop.f32.mrb[0].mxu0
        %1436 = vdwg.mxu0
        %v1437 = vadd.f32 %v1293, %v1431
        %v1438 = vadd.f32 %v1294, %v1433
        %v1439 = vld [vmem:[%s1150 + $0x2] sm:$0xff]
        %v1440 = vld [vmem:[%s1150 + $0xa] sm:$0xff]
        %v1441 = vld [vmem:[%s1150 + $0x1a] sm:$0xff]
        %v1442 = vld [vmem:[%s1150 + $0x22] sm:$0xff]
        %v1443 = vld [vmem:[%s1150 + $0x32] sm:$0xff]
        %v1444 = vld [vmem:[%s1150 + $0x3a] sm:$0xff]
        %v1445 = vld [vmem:[%s1150 + $0x4a] sm:$0xff]
        %v1446 = vld [vmem:[%s1150 + $0x52] sm:$0xff]
        %v1447 = vld [vmem:[%s1150 + $0x62] sm:$0xff]
        %v1448 = vld [vmem:[%s1150 + $0x6a] sm:$0xff]
        %v1449 = vld [vmem:[%s1150 + $0x7a] sm:$0xff]
        %v1450 = vld [vmem:[%s1150 + $0x82] sm:$0xff]
        %v1451 = vld [vmem:[%s1150 + $0x92] sm:$0xff]
        %v1452 = vld [vmem:[%s1150 + $0x9a] sm:$0xff]
        %v1453 = vld [vmem:[%s1150 + $0xaa] sm:$0xff]
        %v1454 = vld [vmem:[%s1150 + $0xb2] sm:$0xff]
        %v1455 = vld [vmem:[%s1150 + $0xc2] sm:$0xff]
        %v1456 = vld [vmem:[%s1150 + $0xca] sm:$0xff]
        %v1457 = vld [vmem:[%s1150 + $0xda] sm:$0xff]
        %v1458 = vld [vmem:[%s1150 + $0xe2] sm:$0xff]
        %v1459 = vld [vmem:[%s1150 + $0xf2] sm:$0xff]
        %v1460 = vld [vmem:[%s1150 + $0xfa] sm:$0xff]
        %v1461 = vld [vmem:[%s1150 + $0x10a] sm:$0xff]
        %v1462 = vld [vmem:[%s1150 + $0x112] sm:$0xff]
        %v1463 = vld [vmem:[%s1150 + $0x122] sm:$0xff]
        %v1464 = vld [vmem:[%s1150 + $0x12a] sm:$0xff]
        %v1465 = vld [vmem:[%s1150 + $0x13a] sm:$0xff]
        %v1466 = vld [vmem:[%s1150 + $0x142] sm:$0xff]
        %v1467 = vld [vmem:[%s1150 + $0x152] sm:$0xff]
        %v1468 = vld [vmem:[%s1150 + $0x15a] sm:$0xff]
        %v1469 = vld [vmem:[%s1150 + $0x16a] sm:$0xff]
        %v1470 = vld [vmem:[%s1150 + $0x172] sm:$0xff]
        %v1471 = vpack.c.bf16 %v1440, %v1439
        %v1472 = vpack.c.bf16 %v1442, %v1441
        %v1473 = vpack.c.bf16 %v1444, %v1443
        %v1474 = vpack.c.bf16 %v1446, %v1445
        %v1475 = vpack.c.bf16 %v1448, %v1447
        %v1476 = vpack.c.bf16 %v1450, %v1449
        %v1477 = vpack.c.bf16 %v1452, %v1451
        %v1478 = vpack.c.bf16 %v1454, %v1453
        %v1479 = vpack.c.bf16 %v1456, %v1455
        %v1480 = vpack.c.bf16 %v1458, %v1457
        %v1481 = vpack.c.bf16 %v1460, %v1459
        %v1482 = vpack.c.bf16 %v1462, %v1461
        %v1483 = vpack.c.bf16 %v1464, %v1463
        %v1484 = vpack.c.bf16 %v1466, %v1465
        %v1485 = vpack.c.bf16 %v1468, %v1467
        %v1486 = vpack.c.bf16 %v1470, %v1469
        %s1487 = scalar_lea.vmem %s1, 32
        %v1488 = vld [vmem:[%s1487] sm:$0xf]
        %v1490 = vsel %vm170, %v1488, 0
        %v1493 = vsel %vm170, %v1471, 0
        %v1496 = vsel %vm170, %v1472, 0
        %v1499 = vsel %vm170, %v1473, 0
        %v1502 = vsel %vm170, %v1474, 0
        %v1505 = vsel %vm170, %v1475, 0
        %v1508 = vsel %vm170, %v1476, 0
        %v1511 = vsel %vm170, %v1477, 0
        %v1514 = vsel %vm170, %v1478, 0
        %v1517 = vsel %vm170, %v1479, 0
        %v1520 = vsel %vm170, %v1480, 0
        %v1523 = vsel %vm170, %v1481, 0
        %v1526 = vsel %vm170, %v1482, 0
        %v1529 = vsel %vm170, %v1483, 0
        %v1532 = vsel %vm170, %v1484, 0
        %v1535 = vsel %vm170, %v1485, 0
        %v1538 = vsel %vm170, %v1486, 0
        %1540 = vmatprep.subr.bf16.mxu0 0
        %1541 = vmatpush1.bf16.xpose.msra.mxu0 %v1493
        %1542 = vmatprep.subr.bf16.mxu0 0
        %1543 = vmatpush1.bf16.xpose.msra.mxu0 %v1496
        %1544 = vmatprep.subr.bf16.mxu0 0
        %1545 = vmatpush1.bf16.xpose.msra.mxu0 %v1499
        %1546 = vmatprep.subr.bf16.mxu0 0
        %1547 = vmatpush1.bf16.xpose.msra.mxu0 %v1502
        %1548 = vmatprep.subr.bf16.mxu0 0
        %1549 = vmatpush1.bf16.xpose.msra.mxu0 %v1505
        %1550 = vmatprep.subr.bf16.mxu0 0
        %1551 = vmatpush1.bf16.xpose.msra.mxu0 %v1508
        %1552 = vmatprep.subr.bf16.mxu0 0
        %1553 = vmatpush1.bf16.xpose.msra.mxu0 %v1511
        %1554 = vmatprep.subr.bf16.mxu0 0
        %1555 = vmatpush1.bf16.xpose.msra.mxu0 %v1514
        %1556 = vmatprep.subr.bf16.mxu0 0
        %1557 = vmatpush1.bf16.xpose.msra.mxu0 %v1517
        %1558 = vmatprep.subr.bf16.mxu0 0
        %1559 = vmatpush1.bf16.xpose.msra.mxu0 %v1520
        %1560 = vmatprep.subr.bf16.mxu0 0
        %1561 = vmatpush1.bf16.xpose.msra.mxu0 %v1523
        %1562 = vmatprep.subr.bf16.mxu0 0
        %1563 = vmatpush1.bf16.xpose.msra.mxu0 %v1526
        %1564 = vmatprep.subr.bf16.mxu0 0
        %1565 = vmatpush1.bf16.xpose.msra.mxu0 %v1529
        %1566 = vmatprep.subr.bf16.mxu0 0
        %1567 = vmatpush1.bf16.xpose.msra.mxu0 %v1532
        %1568 = vmatprep.subr.bf16.mxu0 0
        %1569 = vmatpush1.bf16.xpose.msra.mxu0 %v1535
        %1570 = vmatprep.subr.bf16.mxu0 0
        %1571 = vmatpush1.bf16.xpose.msra.mxu0 %v1538
        %1572 = vmatprep.mubr.bf16.mxu0 0
        %1573 = vmatmul.mubr.bf16.gmra.mrb[0].mxu0 %v1490
        %v1574 = vpop.f32.mrb[0].mxu0
        %v1575 = vadd.f32 0.0, %v1574
        %v1576 = vpop.f32.mrb[0].mxu0
        %v1577 = vadd.f32 0.0, %v1576
        %v1578 = vpop.f32.mrb[0].mxu0
        %v1579 = vpop.f32.mrb[0].mxu0
        %1580 = vdwg.mxu0
        %v1581 = vadd.f32 %v1437, %v1575
        %v1582 = vadd.f32 %v1438, %v1577
        %v1583 = vld [vmem:[%s2] sm:$0xff]
        %1585 = vset.pattern.permute.xlu0 0
        %1586 = vperm.xlu0 %1585, %v1583
        %v1587 = vpop.permute.xlu0 %1586
        %v1589 = vadd.f32 %v1581, %v1587
        %v1590 = vadd.f32 %v1582, %v1587
        %1591 = vst [vmem:[%s163] sm:$0xff] %v1589
        %1592 = vst [vmem:[%s163 + $0x8] sm:$0xff] %v1590
        %s1593 = sand.u32 %s93, 1
        %s1594 = scalar_lea.sflag [#allocation4], %s1593
        %s1595 = sand.u32 %s93, 1
        %s1596 = smul.addr %s1595, 16
        %s1597 = scalar_lea.vmem [#allocation3], %s1596
        // Predicated region
        $region33: #{tpu_custom_call.1} parent=31 // pred_check
          %p1598 = pneg %p103
        $region34: #{tpu_custom_call.1} parent=31 // pred_check_branch
          %1600 = sbr.rel (%p1598) target = $region36
        $region35: #{tpu_custom_call.1} parent=31 // pred_region
          %s1602 = ssub.s32 256, 256
          %1603 = vsyncadd %s1594, %s1602
          %s1604 = smul.addr %s17, 2
          %s1605 = smul.addr %s1604, 128
          %s1606 = scalar_lea.hbm %s3, %s1605
          %s1608 = sshll.u32 %s1597, 4
          %s1609 = int_to_ptr.vmem [resolvable:$true] %s1608
          %1611 = dma.vmem_to_hbm [thread:$0]  %s1609, 256, %s1606, %s1594
        $region36: #{tpu_custom_call.1} parent=31 // pred_fallthru
          _
      $region32: #{tpu_custom_call.1} parent=5 // pred_fallthru
        _
      %p1612 = scmp.le.s32.totalorder 2, %s12
      // Predicated region
      $region37: #{tpu_custom_call.1} parent=5 // pred_check
        %p1613 = pneg %p1612
      $region38: #{tpu_custom_call.1} parent=5 // pred_check_branch
        %1615 = sbr.rel (%p1613) target = $region40
      $region39: #{tpu_custom_call.1} parent=5 // pred_region
        %s1616 = ssub.s32 %s12, 2
        // Predicated region
        $region41: #{tpu_custom_call.1} parent=39 // pred_check
          %p1617 = pneg %p109
        $region42: #{tpu_custom_call.1} parent=39 // pred_check_branch
          %1619 = sbr.rel (%p1617) target = $region44
        $region43: #{tpu_custom_call.1} parent=39 // pred_region
          %s1620 = sand.u32 %s94, 1
          %s1621 = scalar_lea.sflag [#allocation4], %s1620
          %s1622 = sand.u32 %s94, 1
          %s1623 = smul.addr %s1622, 16
          %s1624 = scalar_lea.vmem [#allocation3], %s1623
          %1625 = dma.done %s1621, 256
        $region44: #{tpu_custom_call.1} parent=39 // pred_fallthru
          _
      $region40: #{tpu_custom_call.1} parent=5 // pred_fallthru
        _
    $region6: #{tpu_custom_call.1} parent=1 // loop_footer
      %s16 = sadd.s32 1, %s12
    $region7: #{tpu_custom_call.1} parent=1 // loop_footer_branch
      %11 = sbr.rel target = $region3
    $region8: #{tpu_custom_call.1} parent=1 // loop_exit
      _
    %1626 = vsyncpa [#allocation4], 1
    %s1627 = scalar_lea.sflag [#allocation4], 1
    %1628 = vsyncpa %s1627, 1

</llo_original>
